<compile_context>
chip_gen: v7x
topology: tpu7x:2x2x1
jax: 0.10.0
libtpu: 0.0.40
codegen_flags: <defaults>
</compile_context>

<pallas_src>
import functools

import jax
import jax.numpy as jnp
from jax.experimental import pallas as pl
from jax.experimental.pallas import tpu as pltpu


def _round_up(x, m):
    return ((x + m - 1) // m) * m


def _vmem_budget_bytes():
    # Generation-aware budget: ~0.85 * physical VMEM (v5e/v6e 128 MiB, v7x 64 MiB).
    cap = 64 * 1024 * 1024  # conservative fallback (safe on every generation)
    try:
        cap = int(getattr(pltpu.get_tpu_info(), "vmem_capacity_bytes", cap))
    except Exception:
        pass
    return int(0.85 * cap)


# ----------------------------- fused single-pass path ------------------------------
def _deconv_in_relu_fused_kernel(x_ref, w_ref, m_ref, o_ref, *, K, Wp, L, inv_n, eps):
    # x_ref: (1, Hp*Wp, Cinp) bf16   dilated+padded input, spatial dims flattened
    # w_ref: (K*K*Cinp, Coutp) bf16  flipped / IO-transposed weight, taps stacked
    # m_ref: (L, 1) f32              1.0 where the flattened row is a real pixel
    # o_ref: (1, L, Coutp)           normalized + ReLU output (junk cols/channels
    #                                 sliced off by the wrapper)
    taps = []
    for ky in range(K):
        for kx in range(K):
            start = ky * Wp + kx
            taps.append(x_ref[0, start:start + L, :])
    lhs = jnp.concatenate(taps, axis=-1)                       # (L, K*K*Cinp) bf16
    acc = jnp.dot(lhs, w_ref[...],
                  preferred_element_type=jnp.float32)          # (L, Coutp) f32

    # InstanceNorm2d(affine=False): masked one-pass stats, all post-MXU math in f32.
    m = m_ref[...]                                             # (L, 1) f32 in {0,1}
    ym = acc * m
    s1 = jnp.sum(ym, axis=0, keepdims=True)                    # (1, Coutp)
    s2 = jnp.sum(ym * acc, axis=0, keepdims=True)
    mean = s1 * inv_n
    var = jnp.maximum(s2 * inv_n - mean * mean, 0.0)           # biased variance
    y = (acc - mean) * jax.lax.rsqrt(var + eps)
    o_ref[0] = jnp.maximum(y, 0.0).astype(o_ref.dtype)         # ReLU


# ----------------------------- row-tiled two-pass path -----------------------------
def _deconv_tile_stats_kernel(x_hbm, w_ref, m_ref, y_ref, st_ref, xbuf, sem, *,
                              K, Wp, TH, halo_rows):
    # x_hbm: (N, Hp_pad*Wp, Cinp) bf16 in HBM (pl.ANY)
    # w_ref: (K*K*Cinp, Coutp) bf16
    # m_ref: (TH*Wp, 1) f32 validity mask for this row tile (col & row validity)
    # y_ref: (1, TH*Wp, Coutp) f32   pre-norm conv output for this tile
    # st_ref:(1, 1, 8, Coutp) f32    row 0 = partial sum, row 1 = partial sumsq
    # xbuf:  ((TH+K)*Wp, Cinp) bf16  VMEM scratch: row tile + K-image-row halo
    n = pl.program_id(0)
    t = pl.program_id(1)
    cp = pltpu.make_async_copy(
        x_hbm.at[n, pl.ds(t * (TH * Wp), halo_rows), :], xbuf, sem)
    cp.start()
    cp.wait()  # TODO(synk): double-buffer this halo DMA across grid steps.

    Lt = TH * Wp
    taps = []
    for ky in range(K):
        for kx in range(K):
            start = ky * Wp + kx
            taps.append(xbuf[start:start + Lt, :])
    lhs = jnp.concatenate(taps, axis=-1)                       # (Lt, K*K*Cinp) bf16
    acc = jnp.dot(lhs, w_ref[...], preferred_element_type=jnp.float32)

    m = m_ref[...]                                             # (Lt, 1) f32
    ym = acc * m
    s1 = jnp.sum(ym, axis=0, keepdims=True)
    s2 = jnp.sum(ym * acc, axis=0, keepdims=True)
    coutp = s1.shape[-1]
    st_ref[0, 0] = jnp.concatenate(
        [s1, s2, jnp.zeros((6, coutp), jnp.float32)], axis=0)  # (8, Coutp)
    y_ref[0] = acc


def _norm_relu_kernel(y_ref, p_ref, o_ref):
    # y_ref: (1, TH*Wp, Coutp) f32 pre-norm conv.  p_ref: (1, 8, Coutp) f32 with
    # row 0 = scale (rstd), row 1 = shift (-mean*rstd).
    scale = p_ref[0, 0:1, :]
    shift = p_ref[0, 1:2, :]
    o_ref[0] = jnp.maximum(y_ref[0] * scale + shift, 0.0).astype(o_ref.dtype)


# ----------------------------------- wrapper ---------------------------------------
def deconv_layer(x, w, *, stride, padding, output_padding=1, eps=1e-5,
                 data_format="NCHW", out_dtype=jnp.float32, row_block=None):
    """ConvTranspose2d (bias dropped: cancelled by InstanceNorm) + InstanceNorm2d
    (affine=False) + ReLU.

    x: (N, Cin, H, W) if data_format == "NCHW" else (N, H, W, Cin).
    w: (Cin, Cout, K, K) — PyTorch ConvTranspose2d weight layout.
    row_block: force the row-tiled two-pass path with this many output rows per tile
      (rounded up to a multiple of 8).  None = auto-select based on VMEM budget.
    """
    if data_format == "NCHW":
        N, Cin, H, W = x.shape
        x_nhwc = jnp.transpose(x, (0, 2, 3, 1))
    else:
        assert data_format == "NHWC"
        N, H, W, Cin = x.shape
        x_nhwc = x
    wCin, Cout, K, K2 = w.shape
    assert wCin == Cin and K == K2
    S, P, OP = stride, padding, output_padding
    assert 0 <= OP < S, "output_padding must be smaller than stride"
    assert K - 1 - P >= 0, "requires kernel - 1 - padding >= 0"

    Hout = (H - 1) * S - 2 * P + K + OP
    Wout = (W - 1) * S - 2 * P + K + OP
    lo = K - 1 - P
    hi = lo + OP
    Hp = (H - 1) * S + 1 + lo + hi          # rows after dilation + edge pad
    Wp = (W - 1) * S + 1 + lo + hi
    assert Hp - K + 1 == Hout and Wp - K + 1 == Wout

    # Lane alignment: Cinp multiple of 128 so the in-kernel im2col concat is
    # vreg-aligned; Coutp multiple of 128 for unmasked lane-dense output stores.
    Cinp = _round_up(Cin, 128)
    Coutp = _round_up(Cout, 128)
    KK = K * K

    # ConvTranspose == stride-1 conv with the flipped, IO-transposed weight; fold the
    # K*K taps into one (K*K*Cinp, Coutp) contraction matrix.  bf16 MXU operands.
    wc = jnp.transpose(jnp.flip(w, axis=(2, 3)), (2, 3, 0, 1))   # (K, K, Cin, Cout)
    wc = jnp.pad(wc, ((0, 0), (0, 0), (0, Cinp - Cin), (0, Coutp - Cout)))
    wc = wc.reshape(KK * Cinp, Coutp).astype(jnp.bfloat16)

    budget = _vmem_budget_bytes()
    inv_n = 1.0 / float(Hout * Wout)
    out_isz = jnp.dtype(out_dtype).itemsize
    L = (Hout - 1) * Wp + Wout
    bf16_zero = jnp.zeros((), jnp.bfloat16)

    # Estimated resident footprint of the fused path: double-buffered operands plus
    # the two large in-kernel temporaries (im2col LHS + f32 accumulator).
    fused_bytes = (2 * Hp * Wp * Cinp * 2 + 2 * KK * Cinp * Coutp * 2
                   + 2 * L * 4 + 2 * L * Coutp * out_isz
                   + L * KK * Cinp * 2 + 2 * L * Coutp * 4)
    use_tiled = (row_block is not None) or (fused_bytes > budget)

    if not use_tiled:
        # ----------------- fused single-pass (whole image resident) ----------------
        pad_cfg = ((0, 0, 0), (lo, hi, S - 1), (lo, hi, S - 1), (0, Cinp - Cin, 0))
        x_up = jax.lax.pad(x_nhwc.astype(jnp.bfloat16), bf16_zero, pad_cfg)
        x_flat = x_up.reshape(N, Hp * Wp, Cinp)
        col = jnp.arange(L, dtype=jnp.int32) % Wp
        maskf = (col < Wout).astype(jnp.float32)[:, None]                 # (L, 1)

        kernel = functools.partial(_deconv_in_relu_fused_kernel,
                                   K=K, Wp=Wp, L=L, inv_n=inv_n, eps=eps)
        out = pl.pallas_call(
            kernel,
            out_shape=jax.ShapeDtypeStruct((N, L, Coutp), out_dtype),
            grid=(N,),
            in_specs=[
                pl.BlockSpec((1, Hp * Wp, Cinp), lambda n: (n, 0, 0)),
                pl.BlockSpec((KK * Cinp, Coutp), lambda n: (0, 0)),
                pl.BlockSpec((L, 1), lambda n: (0, 0)),
            ],
            out_specs=pl.BlockSpec((1, L, Coutp), lambda n: (n, 0, 0)),
            compiler_params=pltpu.CompilerParams(
                dimension_semantics=("parallel",),
                vmem_limit_bytes=budget),
        )(x_flat, wc, maskf)
        out = jnp.pad(out, ((0, 0), (0, Hout * Wp - L), (0, 0)))
        out = out.reshape(N, Hout, Wp, Coutp)
    else:
        # ----------------- row-tiled two-pass (large images / v7x) -----------------
        if row_block is not None:
            TH = min(_round_up(row_block, 8), _round_up(Hout, 8))
        else:
            def tile_bytes(th):
                lt = th * Wp
                return (2 * (th + K) * Wp * Cinp * 2 + 2 * KK * Cinp * Coutp * 2
                        + 2 * lt * 4 + lt * KK * Cinp * 2
                        + 2 * lt * Coutp * 4 + 2 * lt * Coutp * 4)
            TH = 8
            while TH + 8 <= _round_up(Hout, 8) and tile_bytes(TH + 8) <= budget // 2:
                TH += 8
        T = -(-Hout // TH)
        Hp_pad = T * TH + K              # extra zero rows cover the last tile's halo
        pad_cfg = ((0, 0, 0), (lo, hi + Hp_pad - Hp, S - 1), (lo, hi, S - 1),
                   (0, Cinp - Cin, 0))
        x_up = jax.lax.pad(x_nhwc.astype(jnp.bfloat16), bf16_zero, pad_cfg)
        x_flat = x_up.reshape(N, Hp_pad * Wp, Cinp)

        Lt = TH * Wp
        g = jnp.arange(T * Lt, dtype=jnp.int32)
        maskf = (((g % Wp) < Wout) &
                 ((g // Wp) < Hout)).astype(jnp.float32)[:, None]    # (T*Lt, 1)

        halo_rows = (TH + K) * Wp
        k1 = functools.partial(_deconv_tile_stats_kernel,
                               K=K, Wp=Wp, TH=TH, halo_rows=halo_rows)
        y_raw, stats = pl.pallas_call(
            k1,
            out_shape=(jax.ShapeDtypeStruct((N, T * Lt, Coutp), jnp.float32),
                       jax.ShapeDtypeStruct((N, T, 8, Coutp), jnp.float32)),
            grid=(N, T),
            in_specs=[
                pl.BlockSpec(memory_space=pl.ANY),                 # raw HBM input
                pl.BlockSpec((KK * Cinp, Coutp), lambda n, t: (0, 0)),
                pl.BlockSpec((Lt, 1), lambda n, t: (t, 0)),
            ],
            out_specs=(
                pl.BlockSpec((1, Lt, Coutp), lambda n, t: (n, t, 0)),
                pl.BlockSpec((1, 1, 8, Coutp), lambda n, t: (n, t, 0, 0)),
            ),
            scratch_shapes=[pltpu.VMEM((halo_rows, Cinp), jnp.bfloat16),
                            pltpu.SemaphoreType.DMA],
            compiler_params=pltpu.CompilerParams(
                dimension_semantics=("parallel", "parallel"),
                vmem_limit_bytes=budget),
        )(x_flat, wc, maskf)

        # Tiny cross-tile stats reduction + affine folding (pure XLA, negligible).
        s1 = jnp.sum(stats[:, :, 0, :], axis=1)                        # (N, Coutp)
        s2 = jnp.sum(stats[:, :, 1, :], axis=1)
        mean = s1 * inv_n
        var = jnp.maximum(s2 * inv_n - mean * mean, 0.0)
        rstd = jax.lax.rsqrt(var + eps)
        params = jnp.concatenate(
            [rstd[:, None, :], (-mean * rstd)[:, None, :],
             jnp.zeros((N, 6, Coutp), jnp.float32)], axis=1)           # (N, 8, Coutp)

        out = pl.pallas_call(
            _norm_relu_kernel,
            out_shape=jax.ShapeDtypeStruct((N, T * Lt, Coutp), out_dtype),
            grid=(N, T),
            in_specs=[
                pl.BlockSpec((1, Lt, Coutp), lambda n, t: (n, t, 0)),
                pl.BlockSpec((1, 8, Coutp), lambda n, t: (n, 0, 0)),
            ],
            out_specs=pl.BlockSpec((1, Lt, Coutp), lambda n, t: (n, t, 0)),
            compiler_params=pltpu.CompilerParams(
                dimension_semantics=("parallel", "parallel"),
                vmem_limit_bytes=budget),
        )(y_raw, params)
        out = out.reshape(N, T * TH, Wp, Coutp)[:, :Hout]

    # TODO(synk): when Cout < 128, pack multiple images / row-groups along the lane
    # dim instead of zero-padding Cout->Coutp to cut output write amplification.
    out = out[:, :, :Wout, :Cout]
    if data_format == "NCHW":
        out = jnp.transpose(out, (0, 3, 1, 2))
    return out


def deconv_layer_reference(x_nchw, w, *, stride, padding, output_padding=1, eps=1e-5):
    """Pure-XLA f32 reference: ConvTranspose2d (no bias) + InstanceNorm2d + ReLU."""
    K = w.shape[-1]
    lo = K - 1 - padding
    hi = lo + output_padding
    w_oihw = jnp.flip(jnp.transpose(w, (1, 0, 2, 3)), axis=(2, 3))   # (Cout,Cin,K,K)
    y = jax.lax.conv_general_dilated(
        x_nchw.astype(jnp.float32), w_oihw.astype(jnp.float32),
        window_strides=(1, 1), padding=((lo, hi), (lo, hi)),
        lhs_dilation=(stride, stride),
        dimension_numbers=("NCHW", "OIHW", "NCHW"),
        precision=jax.lax.Precision.HIGHEST)
    mean = jnp.mean(y, axis=(2, 3), keepdims=True)
    var = jnp.mean(jnp.square(y - mean), axis=(2, 3), keepdims=True)
    return jnp.maximum((y - mean) * jax.lax.rsqrt(var + eps), 0.0)


if __name__ == "__main__":
    key = jax.random.PRNGKey(0)
    k_x, k_w = jax.random.split(key)

    # Small DeconvLayer(channel_input=64, channel_output=32, kernal=3, stride=2,
    # padding=1) with output_padding=1 — CycleGAN decoder block, scaled down.
    N, Cin, H, W = 2, 64, 8, 8
    Cout, K, S, P = 32, 3, 2, 1
    x = jax.random.normal(k_x, (N, Cin, H, W), dtype=jnp.float32)
    w = (jax.random.normal(k_w, (Cin, Cout, K, K), dtype=jnp.float32)
         / jnp.sqrt(Cin * K * K))

    Hout = (H - 1) * S - 2 * P + K + 1   # 8 -> 16 (upsample x2)
    Wout = (W - 1) * S - 2 * P + K + 1
    ref = deconv_layer_reference(x, w, stride=S, padding=P, output_padding=1)
    TOL = 5e-2   # bf16 MXU operands (f32 accumulation) vs f32 HIGHEST reference

    # 1) fused single-pass path (auto-selected for this small shape).
    fwd = jax.jit(functools.partial(deconv_layer, stride=S, padding=P,
                                    output_padding=1))
    out_a = jax.block_until_ready(fwd(x, w))
    assert out_a.shape == (N, Cout, Hout, Wout), out_a.shape
    assert bool(jnp.all(jnp.isfinite(out_a)))
    err_a = float(jnp.max(jnp.abs(out_a - ref)))
    assert err_a < TOL, err_a

    # 2) row-tiled two-pass path, forced with 8-row tiles (exercises halo DMA,
    #    partial-stats reduction and the normalize pass).
    fwd_tiled = jax.jit(functools.partial(deconv_layer, stride=S, padding=P,
                                          output_padding=1, row_block=8))
    out_b = jax.block_until_ready(fwd_tiled(x, w))
    assert out_b.shape == (N, Cout, Hout, Wout), out_b.shape
    assert bool(jnp.all(jnp.isfinite(out_b)))
    err_b = float(jnp.max(jnp.abs(out_b - ref)))
    assert err_b < TOL, err_b

    # 3) NHWC in/out (skips both full-tensor transposes).
    fwd_nhwc = jax.jit(functools.partial(deconv_layer, stride=S, padding=P,
                                         output_padding=1, data_format="NHWC"))
    out_c = jax.block_until_ready(fwd_nhwc(jnp.transpose(x, (0, 2, 3, 1)), w))
    assert out_c.shape == (N, Hout, Wout, Cout), out_c.shape
    err_c = float(jnp.max(jnp.abs(jnp.transpose(out_c, (0, 3, 1, 2)) - ref)))
    assert err_c < TOL, err_c

    print("KERNEL_OK")
</pallas_src>

<mosaic_0001>
module attributes {stable_mosaic.version = 11 : i64} {
  func.func @_deconv_in_relu_fused_kernel(%arg0: i32, %arg1: memref<1x324x128xbf16, #tpu.memory_space<vmem>>, %arg2: memref<1152x128xbf16, #tpu.memory_space<vmem>>, %arg3: memref<286x1xf32, #tpu.memory_space<vmem>>, %arg4: memref<1x286x128xf32, #tpu.memory_space<vmem>>) attributes {dimension_semantics = [#tpu.dimension_semantics<parallel>], iteration_bounds = array<i64: 2>, scalar_prefetch = 0 : i64, scratch_operands = 0 : i64, tpu.core_type = #tpu.core_type<tc>, window_params = [{transform_indices = @transform_0, window_bounds = array<i64: 1, 324, 128>}, {pipeline_mode = #tpu.pipeline_mode<synchronous>, transform_indices = @transform_1, window_bounds = array<i64: 1152, 128>}, {pipeline_mode = #tpu.pipeline_mode<synchronous>, transform_indices = @transform_2, window_bounds = array<i64: 286, 1>}, {transform_indices = @transform_3, window_bounds = array<i64: 1, 286, 128>}]} {
    %c0 = arith.constant 0 : index
    %c0_0 = arith.constant 0 : index
    %c0_1 = arith.constant 0 : index
    %0 = vector.load %arg1[%c0, %c0_0, %c0_1] : memref<1x324x128xbf16, #tpu.memory_space<vmem>>, vector<1x286x128xbf16>
    %1 = vector.shape_cast %0 : vector<1x286x128xbf16> to vector<286x128xbf16>
    %c0_2 = arith.constant 0 : index
    %c1 = arith.constant 1 : index
    %c0_3 = arith.constant 0 : index
    %2 = vector.load %arg1[%c0_2, %c1, %c0_3] : memref<1x324x128xbf16, #tpu.memory_space<vmem>>, vector<1x286x128xbf16>
    %3 = vector.shape_cast %2 : vector<1x286x128xbf16> to vector<286x128xbf16>
    %c0_4 = arith.constant 0 : index
    %c2 = arith.constant 2 : index
    %c0_5 = arith.constant 0 : index
    %4 = vector.load %arg1[%c0_4, %c2, %c0_5] : memref<1x324x128xbf16, #tpu.memory_space<vmem>>, vector<1x286x128xbf16>
    %5 = vector.shape_cast %4 : vector<1x286x128xbf16> to vector<286x128xbf16>
    %c0_6 = arith.constant 0 : index
    %c18 = arith.constant 18 : index
    %c0_7 = arith.constant 0 : index
    %6 = vector.load %arg1[%c0_6, %c18, %c0_7] : memref<1x324x128xbf16, #tpu.memory_space<vmem>>, vector<1x286x128xbf16>
    %7 = vector.shape_cast %6 : vector<1x286x128xbf16> to vector<286x128xbf16>
    %c0_8 = arith.constant 0 : index
    %c19 = arith.constant 19 : index
    %c0_9 = arith.constant 0 : index
    %8 = vector.load %arg1[%c0_8, %c19, %c0_9] : memref<1x324x128xbf16, #tpu.memory_space<vmem>>, vector<1x286x128xbf16>
    %9 = vector.shape_cast %8 : vector<1x286x128xbf16> to vector<286x128xbf16>
    %c0_10 = arith.constant 0 : index
    %c20 = arith.constant 20 : index
    %c0_11 = arith.constant 0 : index
    %10 = vector.load %arg1[%c0_10, %c20, %c0_11] : memref<1x324x128xbf16, #tpu.memory_space<vmem>>, vector<1x286x128xbf16>
    %11 = vector.shape_cast %10 : vector<1x286x128xbf16> to vector<286x128xbf16>
    %c0_12 = arith.constant 0 : index
    %c36 = arith.constant 36 : index
    %c0_13 = arith.constant 0 : index
    %12 = vector.load %arg1[%c0_12, %c36, %c0_13] : memref<1x324x128xbf16, #tpu.memory_space<vmem>>, vector<1x286x128xbf16>
    %13 = vector.shape_cast %12 : vector<1x286x128xbf16> to vector<286x128xbf16>
    %c0_14 = arith.constant 0 : index
    %c37 = arith.constant 37 : index
    %c0_15 = arith.constant 0 : index
    %14 = vector.load %arg1[%c0_14, %c37, %c0_15] : memref<1x324x128xbf16, #tpu.memory_space<vmem>>, vector<1x286x128xbf16>
    %15 = vector.shape_cast %14 : vector<1x286x128xbf16> to vector<286x128xbf16>
    %c0_16 = arith.constant 0 : index
    %c38 = arith.constant 38 : index
    %c0_17 = arith.constant 0 : index
    %16 = vector.load %arg1[%c0_16, %c38, %c0_17] : memref<1x324x128xbf16, #tpu.memory_space<vmem>>, vector<1x286x128xbf16>
    %17 = vector.shape_cast %16 : vector<1x286x128xbf16> to vector<286x128xbf16>
    %18 = tpu.concatenate %1, %3, %5, %7, %9, %11, %13, %15, %17 in 1 : vector<286x128xbf16>, vector<286x128xbf16>, vector<286x128xbf16>, vector<286x128xbf16>, vector<286x128xbf16>, vector<286x128xbf16>, vector<286x128xbf16>, vector<286x128xbf16>, vector<286x128xbf16> -> vector<286x1152xbf16>
    %c0_18 = arith.constant 0 : index
    %c0_19 = arith.constant 0 : index
    %19 = vector.load %arg2[%c0_18, %c0_19] : memref<1152x128xbf16, #tpu.memory_space<vmem>>, vector<1152x128xbf16>
    %cst = arith.constant dense<0.000000e+00> : vector<286x128xf32>
    %20 = tpu.matmul %18, %19, %cst {dimension_numbers = #tpu.dot_dimension_numbers<[1], [0], [0], [1], [0, 0, 1, 1], [], []>} : vector<286x1152xbf16>, vector<1152x128xbf16>, vector<286x128xf32> -> vector<286x128xf32>
    %c0_20 = arith.constant 0 : index
    %c0_21 = arith.constant 0 : index
    %21 = vector.load %arg3[%c0_20, %c0_21] : memref<286x1xf32, #tpu.memory_space<vmem>>, vector<286x1xf32>
    %22 = vector.broadcast %21 : vector<286x1xf32> to vector<286x128xf32>
    %23 = arith.mulf %20, %22 : vector<286x128xf32>
    %cst_22 = arith.constant dense<0.000000e+00> : vector<128xf32>
    %24 = vector.multi_reduction <add>, %23, %cst_22 [0] : vector<286x128xf32> to vector<128xf32>
    %25 = vector.shape_cast %24 : vector<128xf32> to vector<1x128xf32>
    %26 = arith.mulf %23, %20 : vector<286x128xf32>
    %cst_23 = arith.constant dense<0.000000e+00> : vector<128xf32>
    %27 = vector.multi_reduction <add>, %26, %cst_23 [0] : vector<286x128xf32> to vector<128xf32>
    %28 = vector.shape_cast %27 : vector<128xf32> to vector<1x128xf32>
    %cst_24 = arith.constant 3.906250e-03 : f32
    %29 = vector.broadcast %cst_24 : f32 to vector<1x128xf32>
    %30 = arith.mulf %25, %29 : vector<1x128xf32>
    %cst_25 = arith.constant 3.906250e-03 : f32
    %31 = vector.broadcast %cst_25 : f32 to vector<1x128xf32>
    %32 = arith.mulf %28, %31 : vector<1x128xf32>
    %33 = arith.mulf %30, %30 : vector<1x128xf32>
    %34 = arith.subf %32, %33 : vector<1x128xf32>
    %cst_26 = arith.constant 0.000000e+00 : f32
    %35 = vector.broadcast %cst_26 : f32 to vector<1x128xf32>
    %36 = arith.maximumf %34, %35 : vector<1x128xf32>
    %37 = vector.broadcast %30 : vector<1x128xf32> to vector<286x128xf32>
    %38 = arith.subf %20, %37 : vector<286x128xf32>
    %cst_27 = arith.constant 9.99999974E-6 : f32
    %39 = vector.broadcast %cst_27 : f32 to vector<1x128xf32>
    %40 = arith.addf %36, %39 : vector<1x128xf32>
    %41 = math.rsqrt %40 : vector<1x128xf32>
    %42 = vector.broadcast %41 : vector<1x128xf32> to vector<286x128xf32>
    %43 = arith.mulf %38, %42 : vector<286x128xf32>
    %cst_28 = arith.constant 0.000000e+00 : f32
    %44 = vector.broadcast %cst_28 : f32 to vector<286x128xf32>
    %45 = arith.maximumf %43, %44 : vector<286x128xf32>
    %c0_29 = arith.constant 0 : index
    %c0_30 = arith.constant 0 : index
    %c0_31 = arith.constant 0 : index
    %46 = vector.load %arg4[%c0_29, %c0_30, %c0_31] : memref<1x286x128xf32, #tpu.memory_space<vmem>>, vector<1x286x128xf32>
    %47 = vector.shape_cast %46 : vector<1x286x128xf32> to vector<286x128xf32>
    %48 = vector.shape_cast %45 : vector<286x128xf32> to vector<1x286x128xf32>
    tpu.vector_store %arg4[%c0_29, %c0_30, %c0_31], %48 {strides = array<i32>} : memref<1x286x128xf32, #tpu.memory_space<vmem>>, vector<1x286x128xf32>,
    return
  }
  func.func @transform_0(%arg0: i32) -> (i32, i32, i32) {
    %c0_i32 = arith.constant 0 : i32
    %c0_i32_0 = arith.constant 0 : i32
    %c0_i32_1 = arith.constant 0 : i32
    return %arg0, %c0_i32, %c0_i32_0 : i32, i32, i32
  }
  func.func @transform_1(%arg0: i32) -> (i32, i32) {
    %c0_i32 = arith.constant 0 : i32
    %c0_i32_0 = arith.constant 0 : i32
    %c0_i32_1 = arith.constant 0 : i32
    return %c0_i32, %c0_i32_0 : i32, i32
  }
  func.func @transform_2(%arg0: i32) -> (i32, i32) {
    %c0_i32 = arith.constant 0 : i32
    %c0_i32_0 = arith.constant 0 : i32
    %c0_i32_1 = arith.constant 0 : i32
    return %c0_i32, %c0_i32_0 : i32, i32
  }
  func.func @transform_3(%arg0: i32) -> (i32, i32, i32) {
    %c0_i32 = arith.constant 0 : i32
    %c0_i32_0 = arith.constant 0 : i32
    %c0_i32_1 = arith.constant 0 : i32
    return %arg0, %c0_i32, %c0_i32_0 : i32, i32, i32
  }
}

</mosaic_0001>

<llo_original>
// kernel: deconv_layer.1
$region0: #{deconv_layer.1}
  #allocation0 [shape = 'u32[]', space=smem, size = 0x4, offset = 0x4, fixed_abs, tag = 'smem constant byte address 0x4 - core index']
  #allocation1 [shape = 'u32[144,128]{1,0:T(1,128)}', space=vmem, size = 0x12000, scoped, tag = 'internal scratch']
  %s0 = inlined_call_operand.vmem [shape: bf16[2,324,128], index: 0, kind: input, shape index: {}]
  %s1 = inlined_call_operand.vmem [shape: bf16[1152,128], index: 1, kind: input, shape index: {}]
  %s2 = inlined_call_operand.vmem [shape: f32[286,1], index: 2, kind: input, shape index: {}]
  %s3 = inlined_call_operand.vmem [shape: f32[2,286,128], index: 3, kind: output, shape index: {}]
  %s4 = sld [smem:[#allocation0]]
  $region45: #{deconv_layer.1} parent=0
    _
  %s6 = ssub.s32 1, %s4
  %s7 = scalar_select 0, %s6, %s4
  loop: start=0, step=1, limit=4
  $region2: #{deconv_layer.1} parent=0 // loop_pre_header
    _
  $region3: #{deconv_layer.1} parent=0 // loop_header
    %s9 = sphi 0, %s13
    %p10 = scmp.ge.s32.totalorder %s9, 4
    %s19 = sphi 0, %s21
    %s22 = sphi 0, %s19
    %s23 = sphi 0, %s22
    %s39 = sphi 0, %s23
    %s43 = sphi 0, %s43
    %s45 = sphi 0, %s43
    %s46 = sphi 0, %s45
    %s60 = sphi 0, %s46
    %s64 = sphi 0, %s64
    %s66 = sphi 0, %s64
    %s67 = sphi 0, %s66
    %s81 = sphi 0, %s67
    %s87 = sphi 0, %s89
    %s90 = sphi 0, %s87
    %s91 = sphi 0, %s90
    %s107 = sphi 0, %s91
  $region4: #{deconv_layer.1} parent=0 // loop_header_branch
    %12 = sbr.rel (%p10) target = $region8
  $region5: #{deconv_layer.1} parent=0 // loop_body
    %s14 = ssub.s32 %s9, 1
    %s15 = ssub.s32 %s9, 2
    %s16 = sadd.s32 %s9, 1
    %s17 = ssub.s32 %s9, %s16
    %p18 = scmp.eq.s32.totalorder %s17, 0
    %s20 = sadd.s32 %s19, 1
    %s21 = scalar_select %p18, %s19, %s20
    %p24 = pneg %p18
    %p25 = scmp.eq.s32.totalorder %s9, 1
    %p26 = por %p24, %p25
    %p27 = scmp.ne.s32.totalorder %s19, %s22
    %p28 = scmp.eq.s32.totalorder %s9, 0
    %p29 = por %p27, %p28
    %p30 = scmp.ne.s32.totalorder %s19, %s22
    %p31 = scmp.eq.s32.totalorder %s14, 1
    %p32 = por %p30, %p31
    %p33 = scmp.ne.s32.totalorder %s22, %s23
    %p34 = scmp.eq.s32.totalorder %s14, 0
    %p35 = por %p33, %p34
    %p36 = scmp.ne.s32.totalorder %s22, %s23
    %p37 = scmp.eq.s32.totalorder %s15, 1
    %p38 = por %p36, %p37
    %p40 = scmp.ne.s32.totalorder %s23, %s39
    %p41 = scmp.eq.s32.totalorder %s15, 0
    %p42 = por %p40, %p41
    %s44 = sadd.s32 %s43, 1
    %p47 = scmp.eq.s32.totalorder %s9, 1
    %p48 = scmp.ne.s32.totalorder %s43, %s45
    %p49 = scmp.eq.s32.totalorder %s9, 0
    %p50 = por %p48, %p49
    %p51 = scmp.ne.s32.totalorder %s43, %s45
    %p52 = scmp.eq.s32.totalorder %s14, 1
    %p53 = por %p51, %p52
    %p54 = scmp.ne.s32.totalorder %s45, %s46
    %p55 = scmp.eq.s32.totalorder %s14, 0
    %p56 = por %p54, %p55
    %p57 = scmp.ne.s32.totalorder %s45, %s46
    %p58 = scmp.eq.s32.totalorder %s15, 1
    %p59 = por %p57, %p58
    %p61 = scmp.ne.s32.totalorder %s46, %s60
    %p62 = scmp.eq.s32.totalorder %s15, 0
    %p63 = por %p61, %p62
    %s65 = sadd.s32 %s64, 1
    %p68 = scmp.eq.s32.totalorder %s9, 1
    %p69 = scmp.ne.s32.totalorder %s64, %s66
    %p70 = scmp.eq.s32.totalorder %s9, 0
    %p71 = por %p69, %p70
    %p72 = scmp.ne.s32.totalorder %s64, %s66
    %p73 = scmp.eq.s32.totalorder %s14, 1
    %p74 = por %p72, %p73
    %p75 = scmp.ne.s32.totalorder %s66, %s67
    %p76 = scmp.eq.s32.totalorder %s14, 0
    %p77 = por %p75, %p76
    %p78 = scmp.ne.s32.totalorder %s66, %s67
    %p79 = scmp.eq.s32.totalorder %s15, 1
    %p80 = por %p78, %p79
    %p82 = scmp.ne.s32.totalorder %s67, %s81
    %p83 = scmp.eq.s32.totalorder %s15, 0
    %p84 = por %p82, %p83
    %s85 = ssub.s32 %s9, %s16
    %p86 = scmp.eq.s32.totalorder %s85, 0
    %s88 = sadd.s32 %s87, 1
    %s89 = scalar_select %p86, %s87, %s88
    %p92 = pneg %p86
    %p93 = scmp.eq.s32.totalorder %s9, 1
    %p94 = por %p92, %p93
    %p95 = scmp.ne.s32.totalorder %s87, %s90
    %p96 = scmp.eq.s32.totalorder %s9, 0
    %p97 = por %p95, %p96
    %p98 = scmp.ne.s32.totalorder %s87, %s90
    %p99 = scmp.eq.s32.totalorder %s14, 1
    %p100 = por %p98, %p99
    %p101 = scmp.ne.s32.totalorder %s90, %s91
    %p102 = scmp.eq.s32.totalorder %s14, 0
    %p103 = por %p101, %p102
    %p104 = scmp.ne.s32.totalorder %s90, %s91
    %p105 = scmp.eq.s32.totalorder %s15, 1
    %p106 = por %p104, %p105
    %p108 = scmp.ne.s32.totalorder %s91, %s107
    %p109 = scmp.eq.s32.totalorder %s15, 0
    %p110 = por %p108, %p109
    %p111 = scmp.le.s32.totalorder 1, %s9
    %p112 = scmp.lt.s32.totalorder %s9, 3
    %p113 = pnand %p111, %p112
    %p114 = pneg %p113
    // Predicated region
    $region9: #{deconv_layer.1} parent=5 // pred_check
      _
    $region10: #{deconv_layer.1} parent=5 // pred_check_branch
      %116 = sbr.rel (%p113) target = $region12
    $region11: #{deconv_layer.1} parent=5 // pred_region
      %s117 = ssub.s32 %s9, 1
      // Predicated region
      $region13: #{deconv_layer.1} parent=11 // pred_check
        %p118 = pneg %p56
      $region14: #{deconv_layer.1} parent=11 // pred_check_branch
        %120 = sbr.rel (%p118) target = $region16
      $region15: #{deconv_layer.1} parent=11 // pred_region
        _
      $region16: #{deconv_layer.1} parent=11 // pred_fallthru
        _
      // Predicated region
      $region17: #{deconv_layer.1} parent=11 // pred_check
        %p121 = pneg %p77
      $region18: #{deconv_layer.1} parent=11 // pred_check_branch
        %123 = sbr.rel (%p121) target = $region20
      $region19: #{deconv_layer.1} parent=11 // pred_region
        _
      $region20: #{deconv_layer.1} parent=11 // pred_fallthru
        _
    $region12: #{deconv_layer.1} parent=5 // pred_fallthru
      _
    %p124 = scmp.lt.s32.totalorder %s9, 2
    // Predicated region
    $region21: #{deconv_layer.1} parent=5 // pred_check
      %p125 = pneg %p124
    $region22: #{deconv_layer.1} parent=5 // pred_check_branch
      %127 = sbr.rel (%p125) target = $region24
    $region23: #{deconv_layer.1} parent=5 // pred_region
      // Predicated region
      $region25: #{deconv_layer.1} parent=23 // pred_check
        %p128 = pneg %p29
      $region26: #{deconv_layer.1} parent=23 // pred_check_branch
        %130 = sbr.rel (%p128) target = $region28
      $region27: #{deconv_layer.1} parent=23 // pred_region
        %p131 = scmp.lt.s32.totalorder %s9, 1
        %s132 = scalar_select %p131, %s9, 1
        %s133 = smul.addr %s132, 41
        %s134 = smul.addr %s133, 4
        %s135 = scalar_lea.vmem %s0, %s134
      $region28: #{deconv_layer.1} parent=23 // pred_fallthru
        _
    $region24: #{deconv_layer.1} parent=5 // pred_fallthru
      _
    %p136 = scmp.le.s32.totalorder 1, %s9
    %p137 = scmp.lt.s32.totalorder %s9, 3
    %p138 = pnand %p136, %p137
    %p139 = pneg %p138
    // Predicated region
    $region29: #{deconv_layer.1} parent=5 // pred_check
      _
    $region30: #{deconv_layer.1} parent=5 // pred_check_branch
      %141 = sbr.rel (%p138) target = $region32
    $region31: #{deconv_layer.1} parent=5 // pred_region
      %s142 = ssub.s32 %s9, 1
      %p143 = scmp.lt.s32.totalorder %s14, 1
      %s144 = scalar_select %p143, %s14, 1
      %s145 = smul.addr %s144, 41
      %s146 = smul.addr %s145, 4
      %s147 = scalar_lea.vmem %s0, %s146
      %p148 = pneg %p35
      %p149 = pneg %p32
      %p150 = pneg %p56
      %p151 = pneg %p53
      %p152 = pneg %p77
      %p153 = pneg %p74
      %p154 = pneg %p103
      %p155 = pneg %p100
      %p156 = scmp.lt.s32.totalorder %s14, 1
      %s157 = scalar_select %p156, %s14, 1
      %s158 = smul.addr %s157, 36
      %s159 = smul.addr %s158, 8
      %s160 = scalar_lea.vmem %s3, %s159
      %p161 = scmp.lt.s32.totalorder %s14, 1
      %s162 = scalar_select %p161, %s14, 1
      %s163 = smul.addr %s162, 41
      %s164 = smul.addr %s163, 4
      %s165 = scalar_lea.vmem %s0, %s164
      %p166 = scmp.lt.s32.totalorder %s14, 1
      %s167 = scalar_select %p166, %s14, 1
      %s168 = smul.addr %s167, 36
      %s169 = smul.addr %s168, 8
      %s170 = scalar_lea.vmem %s3, %s169
      %v172 = vld [vmem:[%s165] sm:$0xf]
      %v173 = vld [vmem:[%s165 + $0x4] sm:$0xf]
      %v174 = vld [vmem:[%s165 + $0x8] sm:$0xf]
      %v175 = vld [vmem:[%s165 + $0xc] sm:$0xf]
      %v176 = vld [vmem:[%s165 + $0x10] sm:$0xf]
      %v177 = vld [vmem:[%s165 + $0x14] sm:$0xf]
      %v178 = vld [vmem:[%s165 + $0x18] sm:$0xf]
      %v179 = vld [vmem:[%s165 + $0x1c] sm:$0xf]
      %v180 = vld [vmem:[%s165 + $0x20] sm:$0xf]
      %v181 = vld [vmem:[%s165 + $0x24] sm:$0xf]
      %v182 = vld [vmem:[%s165 + $0x28] sm:$0xf]
      %v183 = vld [vmem:[%s165 + $0x2c] sm:$0xf]
      %v184 = vld [vmem:[%s165 + $0x30] sm:$0xf]
      %v185 = vld [vmem:[%s165 + $0x34] sm:$0xf]
      %v186 = vld [vmem:[%s165 + $0x38] sm:$0xf]
      %v187 = vld [vmem:[%s165 + $0x3c] sm:$0xf]
      %v188 = vld [vmem:[%s165 + $0x40] sm:$0xf]
      %v189 = vld [vmem:[%s165 + $0x44] sm:$0xf]
      %v190 = vld [vmem:[%s165 + $0x48] sm:$0xf]
      %v191 = vld [vmem:[%s165 + $0x4c] sm:$0xf]
      %v192 = vld [vmem:[%s165 + $0x50] sm:$0xf]
      %v193 = vld [vmem:[%s165 + $0x54] sm:$0xf]
      %v194 = vld [vmem:[%s165 + $0x58] sm:$0xf]
      %v195 = vld [vmem:[%s165 + $0x5c] sm:$0xf]
      %v196 = vld [vmem:[%s165 + $0x60] sm:$0xf]
      %v197 = vld [vmem:[%s165 + $0x64] sm:$0xf]
      %v198 = vld [vmem:[%s165 + $0x68] sm:$0xf]
      %v199 = vld [vmem:[%s165 + $0x6c] sm:$0xf]
      %v200 = vld [vmem:[%s165 + $0x70] sm:$0xf]
      %v201 = vld [vmem:[%s165 + $0x74] sm:$0xf]
      %v202 = vld [vmem:[%s165 + $0x78] sm:$0xf]
      %v203 = vld [vmem:[%s165 + $0x7c] sm:$0xf]
      %v204 = vld [vmem:[%s165 + $0x80] sm:$0xf]
      %v205 = vld [vmem:[%s165 + $0x84] sm:$0xf]
      %v206 = vld [vmem:[%s165 + $0x88] sm:$0xf]
      %v207 = vld [vmem:[%s165 + $0x8c] sm:$0x7]
      %v208 = vld [vmem:[%s165 + $0x8c] sm:$0xf]
      %v209 = vld [vmem:[%s165] sm:$0xe]
      %v210 = vld [vmem:[%s165 + $0x8] sm:$0xe]
      %v211 = vld [vmem:[%s165 + $0x90] sm:$0xf]
      %v212 = vld [vmem:[%s165 + $0x94] sm:$0xf]
      %v213 = vld [vmem:[%s165 + $0x98] sm:$0x1]
      %v214 = vld [vmem:[%s165 + $0x8] sm:$0xc]
      %v215 = vld [vmem:[%s165 + $0x10] sm:$0xc]
      %v216 = vld [vmem:[%s165 + $0x98] sm:$0xf]
      %v217 = vld [vmem:[%s165 + $0x9c] sm:$0xf]
      %v218 = vld [vmem:[%s165 + $0xa0] sm:$0x1]
      %v219 = vld [vmem:[%s165 + $0xa0] sm:$0x3]
      %v220 = vld [vmem:[%s165 + $0x10] sm:$0x8]
      %v257 = vunpack.c.l.b16 %v172
      %v258 = vunpack.c.l.b16 %v173
      %v259 = vunpack.c.l.b16 %v174
      %v260 = vunpack.c.l.b16 %v175
      %v261 = vunpack.c.l.b16 %v176
      %v262 = vunpack.c.l.b16 %v177
      %v263 = vunpack.c.l.b16 %v178
      %v264 = vunpack.c.l.b16 %v179
      %v265 = vunpack.c.l.b16 %v180
      %v266 = vunpack.c.l.b16 %v181
      %v267 = vunpack.c.l.b16 %v182
      %v268 = vunpack.c.l.b16 %v183
      %v269 = vunpack.c.l.b16 %v184
      %v270 = vunpack.c.l.b16 %v185
      %v271 = vunpack.c.l.b16 %v186
      %v272 = vunpack.c.l.b16 %v187
      %v273 = vunpack.c.l.b16 %v188
      %v274 = vunpack.c.l.b16 %v189
      %v275 = vunpack.c.l.b16 %v190
      %v276 = vunpack.c.l.b16 %v191
      %v277 = vunpack.c.l.b16 %v192
      %v278 = vunpack.c.l.b16 %v193
      %v279 = vunpack.c.l.b16 %v194
      %v280 = vunpack.c.l.b16 %v195
      %v281 = vunpack.c.l.b16 %v196
      %v282 = vunpack.c.l.b16 %v197
      %v283 = vunpack.c.l.b16 %v198
      %v284 = vunpack.c.l.b16 %v199
      %v285 = vunpack.c.l.b16 %v200
      %v286 = vunpack.c.l.b16 %v201
      %v287 = vunpack.c.l.b16 %v202
      %v288 = vunpack.c.l.b16 %v203
      %v289 = vunpack.c.l.b16 %v204
      %v290 = vunpack.c.l.b16 %v205
      %v291 = vunpack.c.l.b16 %v206
      %v292 = vunpack.c.l.b16 %v207
      %v293 = vpack.c.b16 %v258, %v257
      %v294 = vpack.c.b16 %v260, %v259
      %v295 = vpack.c.b16 %v262, %v261
      %v296 = vpack.c.b16 %v264, %v263
      %v297 = vpack.c.b16 %v266, %v265
      %v298 = vpack.c.b16 %v268, %v267
      %v299 = vpack.c.b16 %v270, %v269
      %v300 = vpack.c.b16 %v272, %v271
      %v301 = vpack.c.b16 %v274, %v273
      %v302 = vpack.c.b16 %v276, %v275
      %v303 = vpack.c.b16 %v278, %v277
      %v304 = vpack.c.b16 %v280, %v279
      %v305 = vpack.c.b16 %v282, %v281
      %v306 = vpack.c.b16 %v284, %v283
      %v307 = vpack.c.b16 %v286, %v285
      %v308 = vpack.c.b16 %v288, %v287
      %v309 = vpack.c.b16 %v290, %v289
      %v310 = vpack.c.b16 %v292, %v291
      %v330 = vunpack.c.l.b16 %v208
      %v331 = vpack.c.b16 %v330, %v291
      %vm332 = vsmask.f32 7424
      %v334 = vshrl.u32 %v293, 16
      %v336 = vshll.u32 %v293, 16
      %v338 = vrot.slane %v336, 1
      %v339 = vor.u32 %v334, %v338
      %v341 = vshll.u32 %v294, 16
      %v343 = vrot.slane %v341, 1
      %v344 = vsel %vm332, %v339, %v343
      %v345 = vshrl.u32 %v294, 16
      %v347 = vor.u32 %v345, %v343
      %v349 = vshll.u32 %v295, 16
      %v351 = vrot.slane %v349, 1
      %v352 = vsel %vm332, %v347, %v351
      %v353 = vshrl.u32 %v295, 16
      %v355 = vor.u32 %v353, %v351
      %v357 = vshll.u32 %v296, 16
      %v359 = vrot.slane %v357, 1
      %v360 = vsel %vm332, %v355, %v359
      %v361 = vshrl.u32 %v296, 16
      %v363 = vor.u32 %v361, %v359
      %v365 = vshll.u32 %v297, 16
      %v367 = vrot.slane %v365, 1
      %v368 = vsel %vm332, %v363, %v367
      %v369 = vshrl.u32 %v297, 16
      %v371 = vor.u32 %v369, %v367
      %v373 = vshll.u32 %v298, 16
      %v375 = vrot.slane %v373, 1
      %v376 = vsel %vm332, %v371, %v375
      %v377 = vshrl.u32 %v298, 16
      %v379 = vor.u32 %v377, %v375
      %v381 = vshll.u32 %v299, 16
      %v383 = vrot.slane %v381, 1
      %v384 = vsel %vm332, %v379, %v383
      %v385 = vshrl.u32 %v299, 16
      %v387 = vor.u32 %v385, %v383
      %v389 = vshll.u32 %v300, 16
      %v391 = vrot.slane %v389, 1
      %v392 = vsel %vm332, %v387, %v391
      %v393 = vshrl.u32 %v300, 16
      %v395 = vor.u32 %v393, %v391
      %v397 = vshll.u32 %v301, 16
      %v399 = vrot.slane %v397, 1
      %v400 = vsel %vm332, %v395, %v399
      %v401 = vshrl.u32 %v301, 16
      %v403 = vor.u32 %v401, %v399
      %v405 = vshll.u32 %v302, 16
      %v407 = vrot.slane %v405, 1
      %v408 = vsel %vm332, %v403, %v407
      %v409 = vshrl.u32 %v302, 16
      %v411 = vor.u32 %v409, %v407
      %v413 = vshll.u32 %v303, 16
      %v415 = vrot.slane %v413, 1
      %v416 = vsel %vm332, %v411, %v415
      %v417 = vshrl.u32 %v303, 16
      %v419 = vor.u32 %v417, %v415
      %v421 = vshll.u32 %v304, 16
      %v423 = vrot.slane %v421, 1
      %v424 = vsel %vm332, %v419, %v423
      %v425 = vshrl.u32 %v304, 16
      %v427 = vor.u32 %v425, %v423
      %v429 = vshll.u32 %v305, 16
      %v431 = vrot.slane %v429, 1
      %v432 = vsel %vm332, %v427, %v431
      %v433 = vshrl.u32 %v305, 16
      %v435 = vor.u32 %v433, %v431
      %v437 = vshll.u32 %v306, 16
      %v439 = vrot.slane %v437, 1
      %v440 = vsel %vm332, %v435, %v439
      %v441 = vshrl.u32 %v306, 16
      %v443 = vor.u32 %v441, %v439
      %v445 = vshll.u32 %v307, 16
      %v447 = vrot.slane %v445, 1
      %v448 = vsel %vm332, %v443, %v447
      %v449 = vshrl.u32 %v307, 16
      %v451 = vor.u32 %v449, %v447
      %v453 = vshll.u32 %v308, 16
      %v455 = vrot.slane %v453, 1
      %v456 = vsel %vm332, %v451, %v455
      %v457 = vshrl.u32 %v308, 16
      %v459 = vor.u32 %v457, %v455
      %v461 = vshll.u32 %v309, 16
      %v463 = vrot.slane %v461, 1
      %v464 = vsel %vm332, %v459, %v463
      %v465 = vshrl.u32 %v309, 16
      %v467 = vor.u32 %v465, %v463
      %v469 = vshll.u32 %v331, 16
      %v471 = vrot.slane %v469, 1
      %v472 = vsel %vm332, %v467, %v471
      %v473 = vshrl.u32 %v331, 16
      %v475 = vor.u32 %v473, %v471
      %v495 = vunpack.c.l.b16 %v209
      %v496 = vpack.c.b16 %v258, %v495
      %vm497 = vcmask 1046528
      %v498 = vrot.slane %v496, 1
      %v499 = vrot.slane %v294, 1
      %v500 = vsel %vm497, %v498, %v499
      %v501 = vrot.slane %v295, 1
      %v502 = vsel %vm497, %v499, %v501
      %v503 = vrot.slane %v296, 1
      %v504 = vsel %vm497, %v501, %v503
      %v505 = vrot.slane %v297, 1
      %v506 = vsel %vm497, %v503, %v505
      %v507 = vrot.slane %v298, 1
      %v508 = vsel %vm497, %v505, %v507
      %v509 = vrot.slane %v299, 1
      %v510 = vsel %vm497, %v507, %v509
      %v511 = vrot.slane %v300, 1
      %v512 = vsel %vm497, %v509, %v511
      %v513 = vrot.slane %v301, 1
      %v514 = vsel %vm497, %v511, %v513
      %v515 = vrot.slane %v302, 1
      %v516 = vsel %vm497, %v513, %v515
      %v517 = vrot.slane %v303, 1
      %v518 = vsel %vm497, %v515, %v517
      %v519 = vrot.slane %v304, 1
      %v520 = vsel %vm497, %v517, %v519
      %v521 = vrot.slane %v305, 1
      %v522 = vsel %vm497, %v519, %v521
      %v523 = vrot.slane %v306, 1
      %v524 = vsel %vm497, %v521, %v523
      %v525 = vrot.slane %v307, 1
      %v526 = vsel %vm497, %v523, %v525
      %v527 = vrot.slane %v308, 1
      %v528 = vsel %vm497, %v525, %v527
      %v529 = vrot.slane %v309, 1
      %v530 = vsel %vm497, %v527, %v529
      %v531 = vrot.slane %v331, 1
      %v532 = vsel %vm497, %v529, %v531
      %v554 = vunpack.c.l.b16 %v210
      %v555 = vunpack.c.l.b16 %v211
      %v556 = vunpack.c.l.b16 %v212
      %v557 = vpack.c.b16 %v260, %v554
      %v558 = vpack.c.b16 %v556, %v555
      %v559 = vrot.slane %v557, 1
      %v560 = vsel %vm497, %v559, %v501
      %v561 = vrot.slane %v558, 1
      %v562 = vsel %vm497, %v531, %v561
      %v567 = vunpack.c.l.b16 %v213
      %v568 = vpack.c.b16 %v567, %v567
      %vm569 = vsmask.f32 6400
      %v571 = vshrl.u32 %v557, 16
      %v573 = vrot.slane %v571, 1
      %v574 = vshll.u32 %v557, 16
      %v576 = vrot.slane %v574, 2
      %v577 = vor.u32 %v573, %v576
      %v578 = vrot.slane %v353, 1
      %v579 = vrot.slane %v349, 2
      %v580 = vor.u32 %v578, %v579
      %v581 = vsel %vm569, %v577, %v580
      %v582 = vrot.slane %v361, 1
      %v583 = vrot.slane %v357, 2
      %v584 = vor.u32 %v582, %v583
      %v585 = vsel %vm569, %v580, %v584
      %v586 = vrot.slane %v369, 1
      %v587 = vrot.slane %v365, 2
      %v588 = vor.u32 %v586, %v587
      %v589 = vsel %vm569, %v584, %v588
      %v590 = vrot.slane %v377, 1
      %v591 = vrot.slane %v373, 2
      %v592 = vor.u32 %v590, %v591
      %v593 = vsel %vm569, %v588, %v592
      %v594 = vrot.slane %v385, 1
      %v595 = vrot.slane %v381, 2
      %v596 = vor.u32 %v594, %v595
      %v597 = vsel %vm569, %v592, %v596
      %v598 = vrot.slane %v393, 1
      %v599 = vrot.slane %v389, 2
      %v600 = vor.u32 %v598, %v599
      %v601 = vsel %vm569, %v596, %v600
      %v602 = vrot.slane %v401, 1
      %v603 = vrot.slane %v397, 2
      %v604 = vor.u32 %v602, %v603
      %v605 = vsel %vm569, %v600, %v604
      %v606 = vrot.slane %v409, 1
      %v607 = vrot.slane %v405, 2
      %v608 = vor.u32 %v606, %v607
      %v609 = vsel %vm569, %v604, %v608
      %v610 = vrot.slane %v417, 1
      %v611 = vrot.slane %v413, 2
      %v612 = vor.u32 %v610, %v611
      %v613 = vsel %vm569, %v608, %v612
      %v614 = vrot.slane %v425, 1
      %v615 = vrot.slane %v421, 2
      %v616 = vor.u32 %v614, %v615
      %v617 = vsel %vm569, %v612, %v616
      %v618 = vrot.slane %v433, 1
      %v619 = vrot.slane %v429, 2
      %v620 = vor.u32 %v618, %v619
      %v621 = vsel %vm569, %v616, %v620
      %v622 = vrot.slane %v441, 1
      %v623 = vrot.slane %v437, 2
      %v624 = vor.u32 %v622, %v623
      %v625 = vsel %vm569, %v620, %v624
      %v626 = vrot.slane %v449, 1
      %v627 = vrot.slane %v445, 2
      %v628 = vor.u32 %v626, %v627
      %v629 = vsel %vm569, %v624, %v628
      %v630 = vrot.slane %v457, 1
      %v631 = vrot.slane %v453, 2
      %v632 = vor.u32 %v630, %v631
      %v633 = vsel %vm569, %v628, %v632
      %v634 = vrot.slane %v465, 1
      %v635 = vrot.slane %v461, 2
      %v636 = vor.u32 %v634, %v635
      %v637 = vsel %vm569, %v632, %v636
      %v638 = vrot.slane %v473, 1
      %v639 = vrot.slane %v469, 2
      %v640 = vor.u32 %v638, %v639
      %v641 = vsel %vm569, %v636, %v640
      %v643 = vshrl.u32 %v558, 16
      %v645 = vrot.slane %v643, 1
      %v646 = vshll.u32 %v558, 16
      %v648 = vrot.slane %v646, 2
      %v649 = vor.u32 %v645, %v648
      %v650 = vsel %vm569, %v640, %v649
      %v652 = vshll.u32 %v568, 16
      %v654 = vrot.slane %v652, 2
      %v655 = vsel %vm569, %v649, %v654
      %v675 = vunpack.c.l.b16 %v214
      %v676 = vpack.c.b16 %v260, %v675
      %vm677 = vcmask 1045504
      %v678 = vrot.slane %v676, 2
      %v679 = vrot.slane %v295, 2
      %v680 = vsel %vm677, %v678, %v679
      %v681 = vrot.slane %v296, 2
      %v682 = vsel %vm677, %v679, %v681
      %v683 = vrot.slane %v297, 2
      %v684 = vsel %vm677, %v681, %v683
      %v685 = vrot.slane %v298, 2
      %v686 = vsel %vm677, %v683, %v685
      %v687 = vrot.slane %v299, 2
      %v688 = vsel %vm677, %v685, %v687
      %v689 = vrot.slane %v300, 2
      %v690 = vsel %vm677, %v687, %v689
      %v691 = vrot.slane %v301, 2
      %v692 = vsel %vm677, %v689, %v691
      %v693 = vrot.slane %v302, 2
      %v694 = vsel %vm677, %v691, %v693
      %v695 = vrot.slane %v303, 2
      %v696 = vsel %vm677, %v693, %v695
      %v697 = vrot.slane %v304, 2
      %v698 = vsel %vm677, %v695, %v697
      %v699 = vrot.slane %v305, 2
      %v700 = vsel %vm677, %v697, %v699
      %v701 = vrot.slane %v306, 2
      %v702 = vsel %vm677, %v699, %v701
      %v703 = vrot.slane %v307, 2
      %v704 = vsel %vm677, %v701, %v703
      %v705 = vrot.slane %v308, 2
      %v706 = vsel %vm677, %v703, %v705
      %v707 = vrot.slane %v309, 2
      %v708 = vsel %vm677, %v705, %v707
      %v709 = vrot.slane %v331, 2
      %v710 = vsel %vm677, %v707, %v709
      %v711 = vrot.slane %v558, 2
      %v712 = vsel %vm677, %v709, %v711
      %v713 = vrot.slane %v568, 2
      %v714 = vsel %vm677, %v711, %v713
      %v737 = vunpack.c.l.b16 %v215
      %v738 = vunpack.c.l.b16 %v216
      %v739 = vunpack.c.l.b16 %v217
      %v740 = vunpack.c.l.b16 %v218
      %v741 = vpack.c.b16 %v262, %v737
      %v742 = vpack.c.b16 %v739, %v738
      %v743 = vpack.c.b16 %v740, %v740
      %v744 = vrot.slane %v741, 2
      %v745 = vsel %vm677, %v744, %v681
      %v746 = vrot.slane %v742, 2
      %v747 = vsel %vm677, %v711, %v746
      %v748 = vrot.slane %v743, 2
      %v749 = vsel %vm677, %v746, %v748
      %v754 = vunpack.c.l.b16 %v219
      %v755 = vpack.c.b16 %v754, %v754
      %vm756 = vsmask.f32 5376
      %v758 = vshrl.u32 %v741, 16
      %v760 = vrot.slane %v758, 2
      %v761 = vshll.u32 %v741, 16
      %v763 = vrot.slane %v761, 3
      %v764 = vor.u32 %v760, %v763
      %v765 = vrot.slane %v361, 2
      %v766 = vrot.slane %v357, 3
      %v767 = vor.u32 %v765, %v766
      %v768 = vsel %vm756, %v764, %v767
      %v769 = vrot.slane %v369, 2
      %v770 = vrot.slane %v365, 3
      %v771 = vor.u32 %v769, %v770
      %v772 = vsel %vm756, %v767, %v771
      %v773 = vrot.slane %v377, 2
      %v774 = vrot.slane %v373, 3
      %v775 = vor.u32 %v773, %v774
      %v776 = vsel %vm756, %v771, %v775
      %v777 = vrot.slane %v385, 2
      %v778 = vrot.slane %v381, 3
      %v779 = vor.u32 %v777, %v778
      %v780 = vsel %vm756, %v775, %v779
      %v781 = vrot.slane %v393, 2
      %v782 = vrot.slane %v389, 3
      %v783 = vor.u32 %v781, %v782
      %v784 = vsel %vm756, %v779, %v783
      %v785 = vrot.slane %v401, 2
      %v786 = vrot.slane %v397, 3
      %v787 = vor.u32 %v785, %v786
      %v788 = vsel %vm756, %v783, %v787
      %v789 = vrot.slane %v409, 2
      %v790 = vrot.slane %v405, 3
      %v791 = vor.u32 %v789, %v790
      %v792 = vsel %vm756, %v787, %v791
      %v793 = vrot.slane %v417, 2
      %v794 = vrot.slane %v413, 3
      %v795 = vor.u32 %v793, %v794
      %v796 = vsel %vm756, %v791, %v795
      %v797 = vrot.slane %v425, 2
      %v798 = vrot.slane %v421, 3
      %v799 = vor.u32 %v797, %v798
      %v800 = vsel %vm756, %v795, %v799
      %v801 = vrot.slane %v433, 2
      %v802 = vrot.slane %v429, 3
      %v803 = vor.u32 %v801, %v802
      %v804 = vsel %vm756, %v799, %v803
      %v805 = vrot.slane %v441, 2
      %v806 = vrot.slane %v437, 3
      %v807 = vor.u32 %v805, %v806
      %v808 = vsel %vm756, %v803, %v807
      %v809 = vrot.slane %v449, 2
      %v810 = vrot.slane %v445, 3
      %v811 = vor.u32 %v809, %v810
      %v812 = vsel %vm756, %v807, %v811
      %v813 = vrot.slane %v457, 2
      %v814 = vrot.slane %v453, 3
      %v815 = vor.u32 %v813, %v814
      %v816 = vsel %vm756, %v811, %v815
      %v817 = vrot.slane %v465, 2
      %v818 = vrot.slane %v461, 3
      %v819 = vor.u32 %v817, %v818
      %v820 = vsel %vm756, %v815, %v819
      %v821 = vrot.slane %v473, 2
      %v822 = vrot.slane %v469, 3
      %v823 = vor.u32 %v821, %v822
      %v824 = vsel %vm756, %v819, %v823
      %v825 = vrot.slane %v643, 2
      %v826 = vrot.slane %v646, 3
      %v827 = vor.u32 %v825, %v826
      %v828 = vsel %vm756, %v823, %v827
      %v830 = vshrl.u32 %v742, 16
      %v832 = vrot.slane %v830, 2
      %v833 = vshll.u32 %v742, 16
      %v835 = vrot.slane %v833, 3
      %v836 = vor.u32 %v832, %v835
      %v837 = vsel %vm756, %v827, %v836
      %v839 = vshrl.u32 %v755, 16
      %v841 = vrot.slane %v839, 2
      %v842 = vshll.u32 %v755, 16
      %v844 = vrot.slane %v842, 3
      %v845 = vor.u32 %v841, %v844
      %v846 = vsel %vm756, %v836, %v845
      %v866 = vunpack.c.l.b16 %v220
      %v867 = vpack.c.b16 %v262, %v866
      %vm868 = vcmask 1044480
      %v869 = vrot.slane %v867, 3
      %v870 = vrot.slane %v296, 3
      %v871 = vsel %vm868, %v869, %v870
      %v872 = vrot.slane %v297, 3
      %v873 = vsel %vm868, %v870, %v872
      %v874 = vrot.slane %v298, 3
      %v875 = vsel %vm868, %v872, %v874
      %v876 = vrot.slane %v299, 3
      %v877 = vsel %vm868, %v874, %v876
      %v878 = vrot.slane %v300, 3
      %v879 = vsel %vm868, %v876, %v878
      %v880 = vrot.slane %v301, 3
      %v881 = vsel %vm868, %v878, %v880
      %v882 = vrot.slane %v302, 3
      %v883 = vsel %vm868, %v880, %v882
      %v884 = vrot.slane %v303, 3
      %v885 = vsel %vm868, %v882, %v884
      %v886 = vrot.slane %v304, 3
      %v887 = vsel %vm868, %v884, %v886
      %v888 = vrot.slane %v305, 3
      %v889 = vsel %vm868, %v886, %v888
      %v890 = vrot.slane %v306, 3
      %v891 = vsel %vm868, %v888, %v890
      %v892 = vrot.slane %v307, 3
      %v893 = vsel %vm868, %v890, %v892
      %v894 = vrot.slane %v308, 3
      %v895 = vsel %vm868, %v892, %v894
      %v896 = vrot.slane %v309, 3
      %v897 = vsel %vm868, %v894, %v896
      %v898 = vrot.slane %v331, 3
      %v899 = vsel %vm868, %v896, %v898
      %v900 = vrot.slane %v558, 3
      %v901 = vsel %vm868, %v898, %v900
      %v902 = vrot.slane %v742, 3
      %v903 = vsel %vm868, %v900, %v902
      %v904 = vrot.slane %v755, 3
      %v905 = vsel %vm868, %v902, %v904
      %v924 = vld [vmem:[%s1] sm:$0xf]
      %v925 = vld [vmem:[%s1 + $0x4] sm:$0xf]
      %v926 = vld [vmem:[%s1 + $0x8] sm:$0xf]
      %v927 = vld [vmem:[%s1 + $0xc] sm:$0xf]
      %v928 = vld [vmem:[%s1 + $0x10] sm:$0xf]
      %v929 = vld [vmem:[%s1 + $0x14] sm:$0xf]
      %v930 = vld [vmem:[%s1 + $0x18] sm:$0xf]
      %v931 = vld [vmem:[%s1 + $0x1c] sm:$0xf]
      %v932 = vld [vmem:[%s1 + $0x20] sm:$0xf]
      %v933 = vld [vmem:[%s1 + $0x24] sm:$0xf]
      %v934 = vld [vmem:[%s1 + $0x28] sm:$0xf]
      %v935 = vld [vmem:[%s1 + $0x2c] sm:$0xf]
      %v936 = vld [vmem:[%s1 + $0x30] sm:$0xf]
      %v937 = vld [vmem:[%s1 + $0x34] sm:$0xf]
      %v938 = vld [vmem:[%s1 + $0x38] sm:$0xf]
      %v939 = vld [vmem:[%s1 + $0x3c] sm:$0xf]
      %v940 = vld [vmem:[%s1 + $0x40] sm:$0xf]
      %v941 = vld [vmem:[%s1 + $0x44] sm:$0xf]
      %v942 = vld [vmem:[%s1 + $0x48] sm:$0xf]
      %v943 = vld [vmem:[%s1 + $0x4c] sm:$0xf]
      %v944 = vld [vmem:[%s1 + $0x50] sm:$0xf]
      %v945 = vld [vmem:[%s1 + $0x54] sm:$0xf]
      %v946 = vld [vmem:[%s1 + $0x58] sm:$0xf]
      %v947 = vld [vmem:[%s1 + $0x5c] sm:$0xf]
      %v948 = vld [vmem:[%s1 + $0x60] sm:$0xf]
      %v949 = vld [vmem:[%s1 + $0x64] sm:$0xf]
      %v950 = vld [vmem:[%s1 + $0x68] sm:$0xf]
      %v951 = vld [vmem:[%s1 + $0x6c] sm:$0xf]
      %v952 = vld [vmem:[%s1 + $0x70] sm:$0xf]
      %v953 = vld [vmem:[%s1 + $0x74] sm:$0xf]
      %v954 = vld [vmem:[%s1 + $0x78] sm:$0xf]
      %v955 = vld [vmem:[%s1 + $0x7c] sm:$0xf]
      %v956 = vld [vmem:[%s1 + $0x80] sm:$0xf]
      %v957 = vld [vmem:[%s1 + $0x84] sm:$0xf]
      %v958 = vld [vmem:[%s1 + $0x88] sm:$0xf]
      %v959 = vld [vmem:[%s1 + $0x8c] sm:$0xf]
      %v960 = vld [vmem:[%s1 + $0x90] sm:$0xf]
      %v961 = vld [vmem:[%s1 + $0x94] sm:$0xf]
      %v962 = vld [vmem:[%s1 + $0x98] sm:$0xf]
      %v963 = vld [vmem:[%s1 + $0x9c] sm:$0xf]
      %v964 = vld [vmem:[%s1 + $0xa0] sm:$0xf]
      %v965 = vld [vmem:[%s1 + $0xa4] sm:$0xf]
      %v966 = vld [vmem:[%s1 + $0xa8] sm:$0xf]
      %v967 = vld [vmem:[%s1 + $0xac] sm:$0xf]
      %v968 = vld [vmem:[%s1 + $0xb0] sm:$0xf]
      %v969 = vld [vmem:[%s1 + $0xb4] sm:$0xf]
      %v970 = vld [vmem:[%s1 + $0xb8] sm:$0xf]
      %v971 = vld [vmem:[%s1 + $0xbc] sm:$0xf]
      %v972 = vld [vmem:[%s1 + $0xc0] sm:$0xf]
      %v973 = vld [vmem:[%s1 + $0xc4] sm:$0xf]
      %v974 = vld [vmem:[%s1 + $0xc8] sm:$0xf]
      %v975 = vld [vmem:[%s1 + $0xcc] sm:$0xf]
      %v976 = vld [vmem:[%s1 + $0xd0] sm:$0xf]
      %v977 = vld [vmem:[%s1 + $0xd4] sm:$0xf]
      %v978 = vld [vmem:[%s1 + $0xd8] sm:$0xf]
      %v979 = vld [vmem:[%s1 + $0xdc] sm:$0xf]
      %v980 = vld [vmem:[%s1 + $0xe0] sm:$0xf]
      %v981 = vld [vmem:[%s1 + $0xe4] sm:$0xf]
      %v982 = vld [vmem:[%s1 + $0xe8] sm:$0xf]
      %v983 = vld [vmem:[%s1 + $0xec] sm:$0xf]
      %v984 = vld [vmem:[%s1 + $0xf0] sm:$0xf]
      %v985 = vld [vmem:[%s1 + $0xf4] sm:$0xf]
      %v986 = vld [vmem:[%s1 + $0xf8] sm:$0xf]
      %v987 = vld [vmem:[%s1 + $0xfc] sm:$0xf]
      %v988 = vld [vmem:[%s1 + $0x100] sm:$0xf]
      %v989 = vld [vmem:[%s1 + $0x104] sm:$0xf]
      %v990 = vld [vmem:[%s1 + $0x108] sm:$0xf]
      %v991 = vld [vmem:[%s1 + $0x10c] sm:$0xf]
      %v992 = vld [vmem:[%s1 + $0x110] sm:$0xf]
      %v993 = vld [vmem:[%s1 + $0x114] sm:$0xf]
      %v994 = vld [vmem:[%s1 + $0x118] sm:$0xf]
      %v995 = vld [vmem:[%s1 + $0x11c] sm:$0xf]
      %v996 = vld [vmem:[%s1 + $0x120] sm:$0xf]
      %v997 = vld [vmem:[%s1 + $0x124] sm:$0xf]
      %v998 = vld [vmem:[%s1 + $0x128] sm:$0xf]
      %v999 = vld [vmem:[%s1 + $0x12c] sm:$0xf]
      %v1000 = vld [vmem:[%s1 + $0x130] sm:$0xf]
      %v1001 = vld [vmem:[%s1 + $0x134] sm:$0xf]
      %v1002 = vld [vmem:[%s1 + $0x138] sm:$0xf]
      %v1003 = vld [vmem:[%s1 + $0x13c] sm:$0xf]
      %v1004 = vld [vmem:[%s1 + $0x140] sm:$0xf]
      %v1005 = vld [vmem:[%s1 + $0x144] sm:$0xf]
      %v1006 = vld [vmem:[%s1 + $0x148] sm:$0xf]
      %v1007 = vld [vmem:[%s1 + $0x14c] sm:$0xf]
      %v1008 = vld [vmem:[%s1 + $0x150] sm:$0xf]
      %v1009 = vld [vmem:[%s1 + $0x154] sm:$0xf]
      %v1010 = vld [vmem:[%s1 + $0x158] sm:$0xf]
      %v1011 = vld [vmem:[%s1 + $0x15c] sm:$0xf]
      %v1012 = vld [vmem:[%s1 + $0x160] sm:$0xf]
      %v1013 = vld [vmem:[%s1 + $0x164] sm:$0xf]
      %v1014 = vld [vmem:[%s1 + $0x168] sm:$0xf]
      %v1015 = vld [vmem:[%s1 + $0x16c] sm:$0xf]
      %v1016 = vld [vmem:[%s1 + $0x170] sm:$0xf]
      %v1017 = vld [vmem:[%s1 + $0x174] sm:$0xf]
      %v1018 = vld [vmem:[%s1 + $0x178] sm:$0xf]
      %v1019 = vld [vmem:[%s1 + $0x17c] sm:$0xf]
      %v1020 = vld [vmem:[%s1 + $0x180] sm:$0xf]
      %v1021 = vld [vmem:[%s1 + $0x184] sm:$0xf]
      %v1022 = vld [vmem:[%s1 + $0x188] sm:$0xf]
      %v1023 = vld [vmem:[%s1 + $0x18c] sm:$0xf]
      %v1024 = vld [vmem:[%s1 + $0x190] sm:$0xf]
      %v1025 = vld [vmem:[%s1 + $0x194] sm:$0xf]
      %v1026 = vld [vmem:[%s1 + $0x198] sm:$0xf]
      %v1027 = vld [vmem:[%s1 + $0x19c] sm:$0xf]
      %v1028 = vld [vmem:[%s1 + $0x1a0] sm:$0xf]
      %v1029 = vld [vmem:[%s1 + $0x1a4] sm:$0xf]
      %v1030 = vld [vmem:[%s1 + $0x1a8] sm:$0xf]
      %v1031 = vld [vmem:[%s1 + $0x1ac] sm:$0xf]
      %v1032 = vld [vmem:[%s1 + $0x1b0] sm:$0xf]
      %v1033 = vld [vmem:[%s1 + $0x1b4] sm:$0xf]
      %v1034 = vld [vmem:[%s1 + $0x1b8] sm:$0xf]
      %v1035 = vld [vmem:[%s1 + $0x1bc] sm:$0xf]
      %v1036 = vld [vmem:[%s1 + $0x1c0] sm:$0xf]
      %v1037 = vld [vmem:[%s1 + $0x1c4] sm:$0xf]
      %v1038 = vld [vmem:[%s1 + $0x1c8] sm:$0xf]
      %v1039 = vld [vmem:[%s1 + $0x1cc] sm:$0xf]
      %v1040 = vld [vmem:[%s1 + $0x1d0] sm:$0xf]
      %v1041 = vld [vmem:[%s1 + $0x1d4] sm:$0xf]
      %v1042 = vld [vmem:[%s1 + $0x1d8] sm:$0xf]
      %v1043 = vld [vmem:[%s1 + $0x1dc] sm:$0xf]
      %v1044 = vld [vmem:[%s1 + $0x1e0] sm:$0xf]
      %v1045 = vld [vmem:[%s1 + $0x1e4] sm:$0xf]
      %v1046 = vld [vmem:[%s1 + $0x1e8] sm:$0xf]
      %v1047 = vld [vmem:[%s1 + $0x1ec] sm:$0xf]
      %v1048 = vld [vmem:[%s1 + $0x1f0] sm:$0xf]
      %v1049 = vld [vmem:[%s1 + $0x1f4] sm:$0xf]
      %v1050 = vld [vmem:[%s1 + $0x1f8] sm:$0xf]
      %v1051 = vld [vmem:[%s1 + $0x1fc] sm:$0xf]
      %v1052 = vld [vmem:[%s1 + $0x200] sm:$0xf]
      %v1053 = vld [vmem:[%s1 + $0x204] sm:$0xf]
      %v1054 = vld [vmem:[%s1 + $0x208] sm:$0xf]
      %v1055 = vld [vmem:[%s1 + $0x20c] sm:$0xf]
      %v1056 = vld [vmem:[%s1 + $0x210] sm:$0xf]
      %v1057 = vld [vmem:[%s1 + $0x214] sm:$0xf]
      %v1058 = vld [vmem:[%s1 + $0x218] sm:$0xf]
      %v1059 = vld [vmem:[%s1 + $0x21c] sm:$0xf]
      %v1060 = vld [vmem:[%s1 + $0x220] sm:$0xf]
      %v1061 = vld [vmem:[%s1 + $0x224] sm:$0xf]
      %v1062 = vld [vmem:[%s1 + $0x228] sm:$0xf]
      %v1063 = vld [vmem:[%s1 + $0x22c] sm:$0xf]
      %v1064 = vld [vmem:[%s1 + $0x230] sm:$0xf]
      %v1065 = vld [vmem:[%s1 + $0x234] sm:$0xf]
      %v1066 = vld [vmem:[%s1 + $0x238] sm:$0xf]
      %v1067 = vld [vmem:[%s1 + $0x23c] sm:$0xf]
      %v1212 = vunpack.c.l.b16 %v924
      %v1213 = vunpack.c.l.b16 %v925
      %v1214 = vunpack.c.l.b16 %v926
      %v1215 = vunpack.c.l.b16 %v927
      %v1216 = vunpack.c.l.b16 %v928
      %v1217 = vunpack.c.l.b16 %v929
      %v1218 = vunpack.c.l.b16 %v930
      %v1219 = vunpack.c.l.b16 %v931
      %v1220 = vunpack.c.l.b16 %v932
      %v1221 = vunpack.c.l.b16 %v933
      %v1222 = vunpack.c.l.b16 %v934
      %v1223 = vunpack.c.l.b16 %v935
      %v1224 = vunpack.c.l.b16 %v936
      %v1225 = vunpack.c.l.b16 %v937
      %v1226 = vunpack.c.l.b16 %v938
      %v1227 = vunpack.c.l.b16 %v939
      %v1228 = vunpack.c.l.b16 %v940
      %v1229 = vunpack.c.l.b16 %v941
      %v1230 = vunpack.c.l.b16 %v942
      %v1231 = vunpack.c.l.b16 %v943
      %v1232 = vunpack.c.l.b16 %v944
      %v1233 = vunpack.c.l.b16 %v945
      %v1234 = vunpack.c.l.b16 %v946
      %v1235 = vunpack.c.l.b16 %v947
      %v1236 = vunpack.c.l.b16 %v948
      %v1237 = vunpack.c.l.b16 %v949
      %v1238 = vunpack.c.l.b16 %v950
      %v1239 = vunpack.c.l.b16 %v951
      %v1240 = vunpack.c.l.b16 %v952
      %v1241 = vunpack.c.l.b16 %v953
      %v1242 = vunpack.c.l.b16 %v954
      %v1243 = vunpack.c.l.b16 %v955
      %v1244 = vunpack.c.l.b16 %v956
      %v1245 = vunpack.c.l.b16 %v957
      %v1246 = vunpack.c.l.b16 %v958
      %v1247 = vunpack.c.l.b16 %v959
      %v1248 = vunpack.c.l.b16 %v960
      %v1249 = vunpack.c.l.b16 %v961
      %v1250 = vunpack.c.l.b16 %v962
      %v1251 = vunpack.c.l.b16 %v963
      %v1252 = vunpack.c.l.b16 %v964
      %v1253 = vunpack.c.l.b16 %v965
      %v1254 = vunpack.c.l.b16 %v966
      %v1255 = vunpack.c.l.b16 %v967
      %v1256 = vunpack.c.l.b16 %v968
      %v1257 = vunpack.c.l.b16 %v969
      %v1258 = vunpack.c.l.b16 %v970
      %v1259 = vunpack.c.l.b16 %v971
      %v1260 = vunpack.c.l.b16 %v972
      %v1261 = vunpack.c.l.b16 %v973
      %v1262 = vunpack.c.l.b16 %v974
      %v1263 = vunpack.c.l.b16 %v975
      %v1264 = vunpack.c.l.b16 %v976
      %v1265 = vunpack.c.l.b16 %v977
      %v1266 = vunpack.c.l.b16 %v978
      %v1267 = vunpack.c.l.b16 %v979
      %v1268 = vunpack.c.l.b16 %v980
      %v1269 = vunpack.c.l.b16 %v981
      %v1270 = vunpack.c.l.b16 %v982
      %v1271 = vunpack.c.l.b16 %v983
      %v1272 = vunpack.c.l.b16 %v984
      %v1273 = vunpack.c.l.b16 %v985
      %v1274 = vunpack.c.l.b16 %v986
      %v1275 = vunpack.c.l.b16 %v987
      %v1276 = vunpack.c.l.b16 %v988
      %v1277 = vunpack.c.l.b16 %v989
      %v1278 = vunpack.c.l.b16 %v990
      %v1279 = vunpack.c.l.b16 %v991
      %v1280 = vunpack.c.l.b16 %v992
      %v1281 = vunpack.c.l.b16 %v993
      %v1282 = vunpack.c.l.b16 %v994
      %v1283 = vunpack.c.l.b16 %v995
      %v1284 = vunpack.c.l.b16 %v996
      %v1285 = vunpack.c.l.b16 %v997
      %v1286 = vunpack.c.l.b16 %v998
      %v1287 = vunpack.c.l.b16 %v999
      %v1288 = vunpack.c.l.b16 %v1000
      %v1289 = vunpack.c.l.b16 %v1001
      %v1290 = vunpack.c.l.b16 %v1002
      %v1291 = vunpack.c.l.b16 %v1003
      %v1292 = vunpack.c.l.b16 %v1004
      %v1293 = vunpack.c.l.b16 %v1005
      %v1294 = vunpack.c.l.b16 %v1006
      %v1295 = vunpack.c.l.b16 %v1007
      %v1296 = vunpack.c.l.b16 %v1008
      %v1297 = vunpack.c.l.b16 %v1009
      %v1298 = vunpack.c.l.b16 %v1010
      %v1299 = vunpack.c.l.b16 %v1011
      %v1300 = vunpack.c.l.b16 %v1012
      %v1301 = vunpack.c.l.b16 %v1013
      %v1302 = vunpack.c.l.b16 %v1014
      %v1303 = vunpack.c.l.b16 %v1015
      %v1304 = vunpack.c.l.b16 %v1016
      %v1305 = vunpack.c.l.b16 %v1017
      %v1306 = vunpack.c.l.b16 %v1018
      %v1307 = vunpack.c.l.b16 %v1019
      %v1308 = vunpack.c.l.b16 %v1020
      %v1309 = vunpack.c.l.b16 %v1021
      %v1310 = vunpack.c.l.b16 %v1022
      %v1311 = vunpack.c.l.b16 %v1023
      %v1312 = vunpack.c.l.b16 %v1024
      %v1313 = vunpack.c.l.b16 %v1025
      %v1314 = vunpack.c.l.b16 %v1026
      %v1315 = vunpack.c.l.b16 %v1027
      %v1316 = vunpack.c.l.b16 %v1028
      %v1317 = vunpack.c.l.b16 %v1029
      %v1318 = vunpack.c.l.b16 %v1030
      %v1319 = vunpack.c.l.b16 %v1031
      %v1320 = vunpack.c.l.b16 %v1032
      %v1321 = vunpack.c.l.b16 %v1033
      %v1322 = vunpack.c.l.b16 %v1034
      %v1323 = vunpack.c.l.b16 %v1035
      %v1324 = vunpack.c.l.b16 %v1036
      %v1325 = vunpack.c.l.b16 %v1037
      %v1326 = vunpack.c.l.b16 %v1038
      %v1327 = vunpack.c.l.b16 %v1039
      %v1328 = vunpack.c.l.b16 %v1040
      %v1329 = vunpack.c.l.b16 %v1041
      %v1330 = vunpack.c.l.b16 %v1042
      %v1331 = vunpack.c.l.b16 %v1043
      %v1332 = vunpack.c.l.b16 %v1044
      %v1333 = vunpack.c.l.b16 %v1045
      %v1334 = vunpack.c.l.b16 %v1046
      %v1335 = vunpack.c.l.b16 %v1047
      %v1336 = vunpack.c.l.b16 %v1048
      %v1337 = vunpack.c.l.b16 %v1049
      %v1338 = vunpack.c.l.b16 %v1050
      %v1339 = vunpack.c.l.b16 %v1051
      %v1340 = vunpack.c.l.b16 %v1052
      %v1341 = vunpack.c.l.b16 %v1053
      %v1342 = vunpack.c.l.b16 %v1054
      %v1343 = vunpack.c.l.b16 %v1055
      %v1344 = vunpack.c.l.b16 %v1056
      %v1345 = vunpack.c.l.b16 %v1057
      %v1346 = vunpack.c.l.b16 %v1058
      %v1347 = vunpack.c.l.b16 %v1059
      %v1348 = vunpack.c.l.b16 %v1060
      %v1349 = vunpack.c.l.b16 %v1061
      %v1350 = vunpack.c.l.b16 %v1062
      %v1351 = vunpack.c.l.b16 %v1063
      %v1352 = vunpack.c.l.b16 %v1064
      %v1353 = vunpack.c.l.b16 %v1065
      %v1354 = vunpack.c.l.b16 %v1066
      %v1355 = vunpack.c.l.b16 %v1067
      %v1356 = vpack.c.b16 %v1213, %v1212
      %v1357 = vpack.c.b16 %v1215, %v1214
      %v1358 = vpack.c.b16 %v1217, %v1216
      %v1359 = vpack.c.b16 %v1219, %v1218
      %v1360 = vpack.c.b16 %v1221, %v1220
      %v1361 = vpack.c.b16 %v1223, %v1222
      %v1362 = vpack.c.b16 %v1225, %v1224
      %v1363 = vpack.c.b16 %v1227, %v1226
      %v1364 = vpack.c.b16 %v1229, %v1228
      %v1365 = vpack.c.b16 %v1231, %v1230
      %v1366 = vpack.c.b16 %v1233, %v1232
      %v1367 = vpack.c.b16 %v1235, %v1234
      %v1368 = vpack.c.b16 %v1237, %v1236
      %v1369 = vpack.c.b16 %v1239, %v1238
      %v1370 = vpack.c.b16 %v1241, %v1240
      %v1371 = vpack.c.b16 %v1243, %v1242
      %v1372 = vpack.c.b16 %v1245, %v1244
      %v1373 = vpack.c.b16 %v1247, %v1246
      %v1374 = vpack.c.b16 %v1249, %v1248
      %v1375 = vpack.c.b16 %v1251, %v1250
      %v1376 = vpack.c.b16 %v1253, %v1252
      %v1377 = vpack.c.b16 %v1255, %v1254
      %v1378 = vpack.c.b16 %v1257, %v1256
      %v1379 = vpack.c.b16 %v1259, %v1258
      %v1380 = vpack.c.b16 %v1261, %v1260
      %v1381 = vpack.c.b16 %v1263, %v1262
      %v1382 = vpack.c.b16 %v1265, %v1264
      %v1383 = vpack.c.b16 %v1267, %v1266
      %v1384 = vpack.c.b16 %v1269, %v1268
      %v1385 = vpack.c.b16 %v1271, %v1270
      %v1386 = vpack.c.b16 %v1273, %v1272
      %v1387 = vpack.c.b16 %v1275, %v1274
      %v1388 = vpack.c.b16 %v1277, %v1276
      %v1389 = vpack.c.b16 %v1279, %v1278
      %v1390 = vpack.c.b16 %v1281, %v1280
      %v1391 = vpack.c.b16 %v1283, %v1282
      %v1392 = vpack.c.b16 %v1285, %v1284
      %v1393 = vpack.c.b16 %v1287, %v1286
      %v1394 = vpack.c.b16 %v1289, %v1288
      %v1395 = vpack.c.b16 %v1291, %v1290
      %v1396 = vpack.c.b16 %v1293, %v1292
      %v1397 = vpack.c.b16 %v1295, %v1294
      %v1398 = vpack.c.b16 %v1297, %v1296
      %v1399 = vpack.c.b16 %v1299, %v1298
      %v1400 = vpack.c.b16 %v1301, %v1300
      %v1401 = vpack.c.b16 %v1303, %v1302
      %v1402 = vpack.c.b16 %v1305, %v1304
      %v1403 = vpack.c.b16 %v1307, %v1306
      %v1404 = vpack.c.b16 %v1309, %v1308
      %v1405 = vpack.c.b16 %v1311, %v1310
      %v1406 = vpack.c.b16 %v1313, %v1312
      %v1407 = vpack.c.b16 %v1315, %v1314
      %v1408 = vpack.c.b16 %v1317, %v1316
      %v1409 = vpack.c.b16 %v1319, %v1318
      %v1410 = vpack.c.b16 %v1321, %v1320
      %v1411 = vpack.c.b16 %v1323, %v1322
      %v1412 = vpack.c.b16 %v1325, %v1324
      %v1413 = vpack.c.b16 %v1327, %v1326
      %v1414 = vpack.c.b16 %v1329, %v1328
      %v1415 = vpack.c.b16 %v1331, %v1330
      %v1416 = vpack.c.b16 %v1333, %v1332
      %v1417 = vpack.c.b16 %v1335, %v1334
      %v1418 = vpack.c.b16 %v1337, %v1336
      %v1419 = vpack.c.b16 %v1339, %v1338
      %v1420 = vpack.c.b16 %v1341, %v1340
      %v1421 = vpack.c.b16 %v1343, %v1342
      %v1422 = vpack.c.b16 %v1345, %v1344
      %v1423 = vpack.c.b16 %v1347, %v1346
      %v1424 = vpack.c.b16 %v1349, %v1348
      %v1425 = vpack.c.b16 %v1351, %v1350
      %v1426 = vpack.c.b16 %v1353, %v1352
      %v1427 = vpack.c.b16 %v1355, %v1354
      %1500 = vmatprep.subr.bf16.mxu0 0
      %1501 = vmatpush1.bf16.msra.mxu0 %v1356
      %1502 = vmatprep.subr.bf16.mxu0 0
      %1503 = vmatpush1.bf16.msra.mxu0 %v1357
      %1504 = vmatprep.subr.bf16.mxu0 0
      %1505 = vmatpush1.bf16.msra.mxu0 %v1358
      %1506 = vmatprep.subr.bf16.mxu0 0
      %1507 = vmatpush1.bf16.msra.mxu0 %v1359
      %1508 = vmatprep.subr.bf16.mxu0 0
      %1509 = vmatpush1.bf16.msra.mxu0 %v1360
      %1510 = vmatprep.subr.bf16.mxu0 0
      %1511 = vmatpush1.bf16.msra.mxu0 %v1361
      %1512 = vmatprep.subr.bf16.mxu0 0
      %1513 = vmatpush1.bf16.msra.mxu0 %v1362
      %1514 = vmatprep.subr.bf16.mxu0 0
      %1515 = vmatpush1.bf16.msra.mxu0 %v1363
      %1516 = vmatprep.subr.bf16.mxu0 0
      %1517 = vmatpush1.bf16.msra.mxu0 %v1364
      %1518 = vmatprep.subr.bf16.mxu0 0
      %1519 = vmatpush1.bf16.msra.mxu0 %v1365
      %1520 = vmatprep.subr.bf16.mxu0 0
      %1521 = vmatpush1.bf16.msra.mxu0 %v1366
      %1522 = vmatprep.subr.bf16.mxu0 0
      %1523 = vmatpush1.bf16.msra.mxu0 %v1367
      %1524 = vmatprep.subr.bf16.mxu0 0
      %1525 = vmatpush1.bf16.msra.mxu0 %v1368
      %1526 = vmatprep.subr.bf16.mxu0 0
      %1527 = vmatpush1.bf16.msra.mxu0 %v1369
      %1528 = vmatprep.subr.bf16.mxu0 0
      %1529 = vmatpush1.bf16.msra.mxu0 %v1370
      %1530 = vmatprep.subr.bf16.mxu0 0
      %1531 = vmatpush1.bf16.msra.mxu0 %v1371
      %1532 = vmatprep.mubr.bf16.mxu0 %v344
      %1533 = vmatmul.mubr.bf16.gmra.mrb[0].mxu0 %v293
      %v1534 = vpop.f32.mrb[0].mxu0
      %v1535 = vadd.f32 0.0, %v1534
      %v1536 = vpop.f32.mrb[0].mxu0
      %v1537 = vpop.f32.mrb[0].mxu0
      %v1538 = vadd.f32 0.0, %v1537
      %v1539 = vpop.f32.mrb[0].mxu0
      %1540 = vmatprep.mubr.bf16.mxu0 %v352
      %1541 = vmatmul.mubr.bf16.gmra.mrb[0].mxu0 %v294
      %v1542 = vpop.f32.mrb[0].mxu0
      %v1543 = vadd.f32 0.0, %v1542
      %v1544 = vpop.f32.mrb[0].mxu0
      %v1545 = vpop.f32.mrb[0].mxu0
      %v1546 = vadd.f32 0.0, %v1545
      %v1547 = vpop.f32.mrb[0].mxu0
      %1548 = vmatprep.mubr.bf16.mxu0 %v360
      %1549 = vmatmul.mubr.bf16.gmra.mrb[0].mxu0 %v295
      %v1550 = vpop.f32.mrb[0].mxu0
      %v1551 = vadd.f32 0.0, %v1550
      %v1552 = vpop.f32.mrb[0].mxu0
      %v1553 = vpop.f32.mrb[0].mxu0
      %v1554 = vadd.f32 0.0, %v1553
      %v1555 = vpop.f32.mrb[0].mxu0
      %1556 = vmatprep.mubr.bf16.mxu0 %v368
      %1557 = vmatmul.mubr.bf16.gmra.mrb[0].mxu0 %v296
      %v1558 = vpop.f32.mrb[0].mxu0
      %v1559 = vadd.f32 0.0, %v1558
      %v1560 = vpop.f32.mrb[0].mxu0
      %v1561 = vpop.f32.mrb[0].mxu0
      %v1562 = vadd.f32 0.0, %v1561
      %v1563 = vpop.f32.mrb[0].mxu0
      %1564 = vmatprep.mubr.bf16.mxu0 %v376
      %1565 = vmatmul.mubr.bf16.gmra.mrb[0].mxu0 %v297
      %v1566 = vpop.f32.mrb[0].mxu0
      %v1567 = vadd.f32 0.0, %v1566
      %v1568 = vpop.f32.mrb[0].mxu0
      %v1569 = vpop.f32.mrb[0].mxu0
      %v1570 = vadd.f32 0.0, %v1569
      %v1571 = vpop.f32.mrb[0].mxu0
      %1572 = vmatprep.mubr.bf16.mxu0 %v384
      %1573 = vmatmul.mubr.bf16.gmra.mrb[0].mxu0 %v298
      %v1574 = vpop.f32.mrb[0].mxu0
      %v1575 = vadd.f32 0.0, %v1574
      %v1576 = vpop.f32.mrb[0].mxu0
      %v1577 = vpop.f32.mrb[0].mxu0
      %v1578 = vadd.f32 0.0, %v1577
      %v1579 = vpop.f32.mrb[0].mxu0
      %1580 = vmatprep.mubr.bf16.mxu0 %v392
      %1581 = vmatmul.mubr.bf16.gmra.mrb[0].mxu0 %v299
      %v1582 = vpop.f32.mrb[0].mxu0
      %v1583 = vadd.f32 0.0, %v1582
      %v1584 = vpop.f32.mrb[0].mxu0
      %v1585 = vpop.f32.mrb[0].mxu0
      %v1586 = vadd.f32 0.0, %v1585
      %v1587 = vpop.f32.mrb[0].mxu0
      %1588 = vmatprep.mubr.bf16.mxu0 %v400
      %1589 = vmatmul.mubr.bf16.gmra.mrb[0].mxu0 %v300
      %v1590 = vpop.f32.mrb[0].mxu0
      %v1591 = vadd.f32 0.0, %v1590
      %v1592 = vpop.f32.mrb[0].mxu0
      %v1593 = vpop.f32.mrb[0].mxu0
      %v1594 = vadd.f32 0.0, %v1593
      %v1595 = vpop.f32.mrb[0].mxu0
      %1596 = vmatprep.mubr.bf16.mxu0 %v408
      %1597 = vmatmul.mubr.bf16.gmra.mrb[0].mxu0 %v301
      %v1598 = vpop.f32.mrb[0].mxu0
      %v1599 = vadd.f32 0.0, %v1598
      %v1600 = vpop.f32.mrb[0].mxu0
      %v1601 = vpop.f32.mrb[0].mxu0
      %v1602 = vadd.f32 0.0, %v1601
      %v1603 = vpop.f32.mrb[0].mxu0
      %1604 = vmatprep.mubr.bf16.mxu0 %v416
      %1605 = vmatmul.mubr.bf16.gmra.mrb[0].mxu0 %v302
      %v1606 = vpop.f32.mrb[0].mxu0
      %v1607 = vadd.f32 0.0, %v1606
      %v1608 = vpop.f32.mrb[0].mxu0
      %v1609 = vpop.f32.mrb[0].mxu0
      %v1610 = vadd.f32 0.0, %v1609
      %v1611 = vpop.f32.mrb[0].mxu0
      %1612 = vmatprep.mubr.bf16.mxu0 %v424
      %1613 = vmatmul.mubr.bf16.gmra.mrb[0].mxu0 %v303
      %v1614 = vpop.f32.mrb[0].mxu0
      %v1615 = vadd.f32 0.0, %v1614
      %v1616 = vpop.f32.mrb[0].mxu0
      %v1617 = vpop.f32.mrb[0].mxu0
      %v1618 = vadd.f32 0.0, %v1617
      %v1619 = vpop.f32.mrb[0].mxu0
      %1620 = vmatprep.mubr.bf16.mxu0 %v432
      %1621 = vmatmul.mubr.bf16.gmra.mrb[0].mxu0 %v304
      %v1622 = vpop.f32.mrb[0].mxu0
      %v1623 = vadd.f32 0.0, %v1622
      %v1624 = vpop.f32.mrb[0].mxu0
      %v1625 = vpop.f32.mrb[0].mxu0
      %v1626 = vadd.f32 0.0, %v1625
      %v1627 = vpop.f32.mrb[0].mxu0
      %1628 = vmatprep.mubr.bf16.mxu0 %v440
      %1629 = vmatmul.mubr.bf16.gmra.mrb[0].mxu0 %v305
      %v1630 = vpop.f32.mrb[0].mxu0
      %v1631 = vadd.f32 0.0, %v1630
      %v1632 = vpop.f32.mrb[0].mxu0
      %v1633 = vpop.f32.mrb[0].mxu0
      %v1634 = vadd.f32 0.0, %v1633
      %v1635 = vpop.f32.mrb[0].mxu0
      %1636 = vmatprep.mubr.bf16.mxu0 %v448
      %1637 = vmatmul.mubr.bf16.gmra.mrb[0].mxu0 %v306
      %v1638 = vpop.f32.mrb[0].mxu0
      %v1639 = vadd.f32 0.0, %v1638
      %v1640 = vpop.f32.mrb[0].mxu0
      %v1641 = vpop.f32.mrb[0].mxu0
      %v1642 = vadd.f32 0.0, %v1641
      %v1643 = vpop.f32.mrb[0].mxu0
      %1644 = vmatprep.mubr.bf16.mxu0 %v456
      %1645 = vmatmul.mubr.bf16.gmra.mrb[0].mxu0 %v307
      %v1646 = vpop.f32.mrb[0].mxu0
      %v1647 = vadd.f32 0.0, %v1646
      %v1648 = vpop.f32.mrb[0].mxu0
      %v1649 = vpop.f32.mrb[0].mxu0
      %v1650 = vadd.f32 0.0, %v1649
      %v1651 = vpop.f32.mrb[0].mxu0
      %1652 = vmatprep.mubr.bf16.mxu0 %v464
      %1653 = vmatmul.mubr.bf16.gmra.mrb[0].mxu0 %v308
      %v1654 = vpop.f32.mrb[0].mxu0
      %v1655 = vadd.f32 0.0, %v1654
      %v1656 = vpop.f32.mrb[0].mxu0
      %v1657 = vpop.f32.mrb[0].mxu0
      %v1658 = vadd.f32 0.0, %v1657
      %v1659 = vpop.f32.mrb[0].mxu0
      %1660 = vmatprep.mubr.bf16.mxu0 %v472
      %1661 = vmatmul.mubr.bf16.gmra.mrb[0].mxu0 %v309
      %v1662 = vpop.f32.mrb[0].mxu0
      %v1663 = vadd.f32 0.0, %v1662
      %v1664 = vpop.f32.mrb[0].mxu0
      %v1665 = vpop.f32.mrb[0].mxu0
      %v1666 = vadd.f32 0.0, %v1665
      %v1667 = vpop.f32.mrb[0].mxu0
      %1668 = vmatprep.mubr.bf16.mxu0 %v475
      %1669 = vmatmul.mubr.bf16.gmra.mrb[0].mxu0 %v310
      %v1670 = vpop.f32.mrb[0].mxu0
      %v1671 = vadd.f32 0.0, %v1670
      %v1672 = vpop.f32.mrb[0].mxu0
      %v1673 = vpop.f32.mrb[0].mxu0
      %v1674 = vadd.f32 0.0, %v1673
      %v1675 = vpop.f32.mrb[0].mxu0
      %1676 = vdwg.mxu0
      %1677 = vmatprep.subr.bf16.mxu0 0
      %1678 = vmatpush1.bf16.msra.mxu0 %v1372
      %1679 = vmatprep.subr.bf16.mxu0 0
      %1680 = vmatpush1.bf16.msra.mxu0 %v1373
      %1681 = vmatprep.subr.bf16.mxu0 0
      %1682 = vmatpush1.bf16.msra.mxu0 %v1374
      %1683 = vmatprep.subr.bf16.mxu0 0
      %1684 = vmatpush1.bf16.msra.mxu0 %v1375
      %1685 = vmatprep.subr.bf16.mxu0 0
      %1686 = vmatpush1.bf16.msra.mxu0 %v1376
      %1687 = vmatprep.subr.bf16.mxu0 0
      %1688 = vmatpush1.bf16.msra.mxu0 %v1377
      %1689 = vmatprep.subr.bf16.mxu0 0
      %1690 = vmatpush1.bf16.msra.mxu0 %v1378
      %1691 = vmatprep.subr.bf16.mxu0 0
      %1692 = vmatpush1.bf16.msra.mxu0 %v1379
      %1693 = vmatprep.subr.bf16.mxu0 0
      %1694 = vmatpush1.bf16.msra.mxu0 %v1380
      %1695 = vmatprep.subr.bf16.mxu0 0
      %1696 = vmatpush1.bf16.msra.mxu0 %v1381
      %1697 = vmatprep.subr.bf16.mxu0 0
      %1698 = vmatpush1.bf16.msra.mxu0 %v1382
      %1699 = vmatprep.subr.bf16.mxu0 0
      %1700 = vmatpush1.bf16.msra.mxu0 %v1383
      %1701 = vmatprep.subr.bf16.mxu0 0
      %1702 = vmatpush1.bf16.msra.mxu0 %v1384
      %1703 = vmatprep.subr.bf16.mxu0 0
      %1704 = vmatpush1.bf16.msra.mxu0 %v1385
      %1705 = vmatprep.subr.bf16.mxu0 0
      %1706 = vmatpush1.bf16.msra.mxu0 %v1386
      %1707 = vmatprep.subr.bf16.mxu0 0
      %1708 = vmatpush1.bf16.msra.mxu0 %v1387
      %1709 = vmatprep.mubr.bf16.mxu0 %v560
      %1710 = vmatmul.mubr.bf16.gmra.mrb[0].mxu0 %v500
      %v1711 = vpop.f32.mrb[0].mxu0
      %v1712 = vadd.f32 %v1535, %v1711
      %v1713 = vpop.f32.mrb[0].mxu0
      %v1714 = vpop.f32.mrb[0].mxu0
      %v1715 = vadd.f32 %v1538, %v1714
      %v1716 = vpop.f32.mrb[0].mxu0
      %1717 = vmatprep.mubr.bf16.mxu0 %v504
      %1718 = vmatmul.mubr.bf16.gmra.mrb[0].mxu0 %v502
      %v1719 = vpop.f32.mrb[0].mxu0
      %v1720 = vadd.f32 %v1543, %v1719
      %v1721 = vpop.f32.mrb[0].mxu0
      %v1722 = vpop.f32.mrb[0].mxu0
      %v1723 = vadd.f32 %v1546, %v1722
      %v1724 = vpop.f32.mrb[0].mxu0
      %1725 = vmatprep.mubr.bf16.mxu0 %v506
      %1726 = vmatmul.mubr.bf16.gmra.mrb[0].mxu0 %v504
      %v1727 = vpop.f32.mrb[0].mxu0
      %v1728 = vadd.f32 %v1551, %v1727
      %v1729 = vpop.f32.mrb[0].mxu0
      %v1730 = vpop.f32.mrb[0].mxu0
      %v1731 = vadd.f32 %v1554, %v1730
      %v1732 = vpop.f32.mrb[0].mxu0
      %1733 = vmatprep.mubr.bf16.mxu0 %v508
      %1734 = vmatmul.mubr.bf16.gmra.mrb[0].mxu0 %v506
      %v1735 = vpop.f32.mrb[0].mxu0
      %v1736 = vadd.f32 %v1559, %v1735
      %v1737 = vpop.f32.mrb[0].mxu0
      %v1738 = vpop.f32.mrb[0].mxu0
      %v1739 = vadd.f32 %v1562, %v1738
      %v1740 = vpop.f32.mrb[0].mxu0
      %1741 = vmatprep.mubr.bf16.mxu0 %v510
      %1742 = vmatmul.mubr.bf16.gmra.mrb[0].mxu0 %v508
      %v1743 = vpop.f32.mrb[0].mxu0
      %v1744 = vadd.f32 %v1567, %v1743
      %v1745 = vpop.f32.mrb[0].mxu0
      %v1746 = vpop.f32.mrb[0].mxu0
      %v1747 = vadd.f32 %v1570, %v1746
      %v1748 = vpop.f32.mrb[0].mxu0
      %1749 = vmatprep.mubr.bf16.mxu0 %v512
      %1750 = vmatmul.mubr.bf16.gmra.mrb[0].mxu0 %v510
      %v1751 = vpop.f32.mrb[0].mxu0
      %v1752 = vadd.f32 %v1575, %v1751
      %v1753 = vpop.f32.mrb[0].mxu0
      %v1754 = vpop.f32.mrb[0].mxu0
      %v1755 = vadd.f32 %v1578, %v1754
      %v1756 = vpop.f32.mrb[0].mxu0
      %1757 = vmatprep.mubr.bf16.mxu0 %v514
      %1758 = vmatmul.mubr.bf16.gmra.mrb[0].mxu0 %v512
      %v1759 = vpop.f32.mrb[0].mxu0
      %v1760 = vadd.f32 %v1583, %v1759
      %v1761 = vpop.f32.mrb[0].mxu0
      %v1762 = vpop.f32.mrb[0].mxu0
      %v1763 = vadd.f32 %v1586, %v1762
      %v1764 = vpop.f32.mrb[0].mxu0
      %1765 = vmatprep.mubr.bf16.mxu0 %v516
      %1766 = vmatmul.mubr.bf16.gmra.mrb[0].mxu0 %v514
      %v1767 = vpop.f32.mrb[0].mxu0
      %v1768 = vadd.f32 %v1591, %v1767
      %v1769 = vpop.f32.mrb[0].mxu0
      %v1770 = vpop.f32.mrb[0].mxu0
      %v1771 = vadd.f32 %v1594, %v1770
      %v1772 = vpop.f32.mrb[0].mxu0
      %1773 = vmatprep.mubr.bf16.mxu0 %v518
      %1774 = vmatmul.mubr.bf16.gmra.mrb[0].mxu0 %v516
      %v1775 = vpop.f32.mrb[0].mxu0
      %v1776 = vadd.f32 %v1599, %v1775
      %v1777 = vpop.f32.mrb[0].mxu0
      %v1778 = vpop.f32.mrb[0].mxu0
      %v1779 = vadd.f32 %v1602, %v1778
      %v1780 = vpop.f32.mrb[0].mxu0
      %1781 = vmatprep.mubr.bf16.mxu0 %v520
      %1782 = vmatmul.mubr.bf16.gmra.mrb[0].mxu0 %v518
      %v1783 = vpop.f32.mrb[0].mxu0
      %v1784 = vadd.f32 %v1607, %v1783
      %v1785 = vpop.f32.mrb[0].mxu0
      %v1786 = vpop.f32.mrb[0].mxu0
      %v1787 = vadd.f32 %v1610, %v1786
      %v1788 = vpop.f32.mrb[0].mxu0
      %1789 = vmatprep.mubr.bf16.mxu0 %v522
      %1790 = vmatmul.mubr.bf16.gmra.mrb[0].mxu0 %v520
      %v1791 = vpop.f32.mrb[0].mxu0
      %v1792 = vadd.f32 %v1615, %v1791
      %v1793 = vpop.f32.mrb[0].mxu0
      %v1794 = vpop.f32.mrb[0].mxu0
      %v1795 = vadd.f32 %v1618, %v1794
      %v1796 = vpop.f32.mrb[0].mxu0
      %1797 = vmatprep.mubr.bf16.mxu0 %v524
      %1798 = vmatmul.mubr.bf16.gmra.mrb[0].mxu0 %v522
      %v1799 = vpop.f32.mrb[0].mxu0
      %v1800 = vadd.f32 %v1623, %v1799
      %v1801 = vpop.f32.mrb[0].mxu0
      %v1802 = vpop.f32.mrb[0].mxu0
      %v1803 = vadd.f32 %v1626, %v1802
      %v1804 = vpop.f32.mrb[0].mxu0
      %1805 = vmatprep.mubr.bf16.mxu0 %v526
      %1806 = vmatmul.mubr.bf16.gmra.mrb[0].mxu0 %v524
      %v1807 = vpop.f32.mrb[0].mxu0
      %v1808 = vadd.f32 %v1631, %v1807
      %v1809 = vpop.f32.mrb[0].mxu0
      %v1810 = vpop.f32.mrb[0].mxu0
      %v1811 = vadd.f32 %v1634, %v1810
      %v1812 = vpop.f32.mrb[0].mxu0
      %1813 = vmatprep.mubr.bf16.mxu0 %v528
      %1814 = vmatmul.mubr.bf16.gmra.mrb[0].mxu0 %v526
      %v1815 = vpop.f32.mrb[0].mxu0
      %v1816 = vadd.f32 %v1639, %v1815
      %v1817 = vpop.f32.mrb[0].mxu0
      %v1818 = vpop.f32.mrb[0].mxu0
      %v1819 = vadd.f32 %v1642, %v1818
      %v1820 = vpop.f32.mrb[0].mxu0
      %1821 = vmatprep.mubr.bf16.mxu0 %v530
      %1822 = vmatmul.mubr.bf16.gmra.mrb[0].mxu0 %v528
      %v1823 = vpop.f32.mrb[0].mxu0
      %v1824 = vadd.f32 %v1647, %v1823
      %v1825 = vpop.f32.mrb[0].mxu0
      %v1826 = vpop.f32.mrb[0].mxu0
      %v1827 = vadd.f32 %v1650, %v1826
      %v1828 = vpop.f32.mrb[0].mxu0
      %1829 = vmatprep.mubr.bf16.mxu0 %v532
      %1830 = vmatmul.mubr.bf16.gmra.mrb[0].mxu0 %v530
      %v1831 = vpop.f32.mrb[0].mxu0
      %v1832 = vadd.f32 %v1655, %v1831
      %v1833 = vpop.f32.mrb[0].mxu0
      %v1834 = vpop.f32.mrb[0].mxu0
      %v1835 = vadd.f32 %v1658, %v1834
      %v1836 = vpop.f32.mrb[0].mxu0
      %1837 = vmatprep.mubr.bf16.mxu0 %v562
      %1838 = vmatmul.mubr.bf16.gmra.mrb[0].mxu0 %v532
      %v1839 = vpop.f32.mrb[0].mxu0
      %v1840 = vadd.f32 %v1663, %v1839
      %v1841 = vpop.f32.mrb[0].mxu0
      %v1842 = vpop.f32.mrb[0].mxu0
      %v1843 = vadd.f32 %v1666, %v1842
      %v1844 = vpop.f32.mrb[0].mxu0
      %1845 = vmatprep.mubr.bf16.mxu0 %v561
      %1846 = vmatmul.mubr.bf16.gmra.mrb[0].mxu0 %v531
      %v1847 = vpop.f32.mrb[0].mxu0
      %v1848 = vadd.f32 %v1671, %v1847
      %v1849 = vpop.f32.mrb[0].mxu0
      %v1850 = vpop.f32.mrb[0].mxu0
      %v1851 = vadd.f32 %v1674, %v1850
      %v1852 = vpop.f32.mrb[0].mxu0
      %1853 = vdwg.mxu0
      %1854 = vmatprep.subr.bf16.mxu0 0
      %1855 = vmatpush1.bf16.msra.mxu0 %v1388
      %1856 = vmatprep.subr.bf16.mxu0 0
      %1857 = vmatpush1.bf16.msra.mxu0 %v1389
      %1858 = vmatprep.subr.bf16.mxu0 0
      %1859 = vmatpush1.bf16.msra.mxu0 %v1390
      %1860 = vmatprep.subr.bf16.mxu0 0
      %1861 = vmatpush1.bf16.msra.mxu0 %v1391
      %1862 = vmatprep.subr.bf16.mxu0 0
      %1863 = vmatpush1.bf16.msra.mxu0 %v1392
      %1864 = vmatprep.subr.bf16.mxu0 0
      %1865 = vmatpush1.bf16.msra.mxu0 %v1393
      %1866 = vmatprep.subr.bf16.mxu0 0
      %1867 = vmatpush1.bf16.msra.mxu0 %v1394
      %1868 = vmatprep.subr.bf16.mxu0 0
      %1869 = vmatpush1.bf16.msra.mxu0 %v1395
      %1870 = vmatprep.subr.bf16.mxu0 0
      %1871 = vmatpush1.bf16.msra.mxu0 %v1396
      %1872 = vmatprep.subr.bf16.mxu0 0
      %1873 = vmatpush1.bf16.msra.mxu0 %v1397
      %1874 = vmatprep.subr.bf16.mxu0 0
      %1875 = vmatpush1.bf16.msra.mxu0 %v1398
      %1876 = vmatprep.subr.bf16.mxu0 0
      %1877 = vmatpush1.bf16.msra.mxu0 %v1399
      %1878 = vmatprep.subr.bf16.mxu0 0
      %1879 = vmatpush1.bf16.msra.mxu0 %v1400
      %1880 = vmatprep.subr.bf16.mxu0 0
      %1881 = vmatpush1.bf16.msra.mxu0 %v1401
      %1882 = vmatprep.subr.bf16.mxu0 0
      %1883 = vmatpush1.bf16.msra.mxu0 %v1402
      %1884 = vmatprep.subr.bf16.mxu0 0
      %1885 = vmatpush1.bf16.msra.mxu0 %v1403
      %1886 = vmatprep.mubr.bf16.mxu0 %v680
      %1887 = vmatmul.mubr.bf16.gmra.mrb[0].mxu0 %v581
      %v1888 = vpop.f32.mrb[0].mxu0
      %v1889 = vadd.f32 %v1712, %v1888
      %v1890 = vpop.f32.mrb[0].mxu0
      %v1891 = vpop.f32.mrb[0].mxu0
      %v1892 = vadd.f32 %v1715, %v1891
      %v1893 = vpop.f32.mrb[0].mxu0
      %1894 = vmatprep.mubr.bf16.mxu0 %v682
      %1895 = vmatmul.mubr.bf16.gmra.mrb[0].mxu0 %v585
      %v1896 = vpop.f32.mrb[0].mxu0
      %v1897 = vadd.f32 %v1720, %v1896
      %v1898 = vpop.f32.mrb[0].mxu0
      %v1899 = vpop.f32.mrb[0].mxu0
      %v1900 = vadd.f32 %v1723, %v1899
      %v1901 = vpop.f32.mrb[0].mxu0
      %1902 = vmatprep.mubr.bf16.mxu0 %v684
      %1903 = vmatmul.mubr.bf16.gmra.mrb[0].mxu0 %v589
      %v1904 = vpop.f32.mrb[0].mxu0
      %v1905 = vadd.f32 %v1728, %v1904
      %v1906 = vpop.f32.mrb[0].mxu0
      %v1907 = vpop.f32.mrb[0].mxu0
      %v1908 = vadd.f32 %v1731, %v1907
      %v1909 = vpop.f32.mrb[0].mxu0
      %1910 = vmatprep.mubr.bf16.mxu0 %v686
      %1911 = vmatmul.mubr.bf16.gmra.mrb[0].mxu0 %v593
      %v1912 = vpop.f32.mrb[0].mxu0
      %v1913 = vadd.f32 %v1736, %v1912
      %v1914 = vpop.f32.mrb[0].mxu0
      %v1915 = vpop.f32.mrb[0].mxu0
      %v1916 = vadd.f32 %v1739, %v1915
      %v1917 = vpop.f32.mrb[0].mxu0
      %1918 = vmatprep.mubr.bf16.mxu0 %v688
      %1919 = vmatmul.mubr.bf16.gmra.mrb[0].mxu0 %v597
      %v1920 = vpop.f32.mrb[0].mxu0
      %v1921 = vadd.f32 %v1744, %v1920
      %v1922 = vpop.f32.mrb[0].mxu0
      %v1923 = vpop.f32.mrb[0].mxu0
      %v1924 = vadd.f32 %v1747, %v1923
      %v1925 = vpop.f32.mrb[0].mxu0
      %1926 = vmatprep.mubr.bf16.mxu0 %v690
      %1927 = vmatmul.mubr.bf16.gmra.mrb[0].mxu0 %v601
      %v1928 = vpop.f32.mrb[0].mxu0
      %v1929 = vadd.f32 %v1752, %v1928
      %v1930 = vpop.f32.mrb[0].mxu0
      %v1931 = vpop.f32.mrb[0].mxu0
      %v1932 = vadd.f32 %v1755, %v1931
      %v1933 = vpop.f32.mrb[0].mxu0
      %1934 = vmatprep.mubr.bf16.mxu0 %v692
      %1935 = vmatmul.mubr.bf16.gmra.mrb[0].mxu0 %v605
      %v1936 = vpop.f32.mrb[0].mxu0
      %v1937 = vadd.f32 %v1760, %v1936
      %v1938 = vpop.f32.mrb[0].mxu0
      %v1939 = vpop.f32.mrb[0].mxu0
      %v1940 = vadd.f32 %v1763, %v1939
      %v1941 = vpop.f32.mrb[0].mxu0
      %1942 = vmatprep.mubr.bf16.mxu0 %v694
      %1943 = vmatmul.mubr.bf16.gmra.mrb[0].mxu0 %v609
      %v1944 = vpop.f32.mrb[0].mxu0
      %v1945 = vadd.f32 %v1768, %v1944
      %v1946 = vpop.f32.mrb[0].mxu0
      %v1947 = vpop.f32.mrb[0].mxu0
      %v1948 = vadd.f32 %v1771, %v1947
      %v1949 = vpop.f32.mrb[0].mxu0
      %1950 = vmatprep.mubr.bf16.mxu0 %v696
      %1951 = vmatmul.mubr.bf16.gmra.mrb[0].mxu0 %v613
      %v1952 = vpop.f32.mrb[0].mxu0
      %v1953 = vadd.f32 %v1776, %v1952
      %v1954 = vpop.f32.mrb[0].mxu0
      %v1955 = vpop.f32.mrb[0].mxu0
      %v1956 = vadd.f32 %v1779, %v1955
      %v1957 = vpop.f32.mrb[0].mxu0
      %1958 = vmatprep.mubr.bf16.mxu0 %v698
      %1959 = vmatmul.mubr.bf16.gmra.mrb[0].mxu0 %v617
      %v1960 = vpop.f32.mrb[0].mxu0
      %v1961 = vadd.f32 %v1784, %v1960
      %v1962 = vpop.f32.mrb[0].mxu0
      %v1963 = vpop.f32.mrb[0].mxu0
      %v1964 = vadd.f32 %v1787, %v1963
      %v1965 = vpop.f32.mrb[0].mxu0
      %1966 = vmatprep.mubr.bf16.mxu0 %v700
      %1967 = vmatmul.mubr.bf16.gmra.mrb[0].mxu0 %v621
      %v1968 = vpop.f32.mrb[0].mxu0
      %v1969 = vadd.f32 %v1792, %v1968
      %v1970 = vpop.f32.mrb[0].mxu0
      %v1971 = vpop.f32.mrb[0].mxu0
      %v1972 = vadd.f32 %v1795, %v1971
      %v1973 = vpop.f32.mrb[0].mxu0
      %1974 = vmatprep.mubr.bf16.mxu0 %v702
      %1975 = vmatmul.mubr.bf16.gmra.mrb[0].mxu0 %v625
      %v1976 = vpop.f32.mrb[0].mxu0
      %v1977 = vadd.f32 %v1800, %v1976
      %v1978 = vpop.f32.mrb[0].mxu0
      %v1979 = vpop.f32.mrb[0].mxu0
      %v1980 = vadd.f32 %v1803, %v1979
      %v1981 = vpop.f32.mrb[0].mxu0
      %1982 = vmatprep.mubr.bf16.mxu0 %v704
      %1983 = vmatmul.mubr.bf16.gmra.mrb[0].mxu0 %v629
      %v1984 = vpop.f32.mrb[0].mxu0
      %v1985 = vadd.f32 %v1808, %v1984
      %v1986 = vpop.f32.mrb[0].mxu0
      %v1987 = vpop.f32.mrb[0].mxu0
      %v1988 = vadd.f32 %v1811, %v1987
      %v1989 = vpop.f32.mrb[0].mxu0
      %1990 = vmatprep.mubr.bf16.mxu0 %v706
      %1991 = vmatmul.mubr.bf16.gmra.mrb[0].mxu0 %v633
      %v1992 = vpop.f32.mrb[0].mxu0
      %v1993 = vadd.f32 %v1816, %v1992
      %v1994 = vpop.f32.mrb[0].mxu0
      %v1995 = vpop.f32.mrb[0].mxu0
      %v1996 = vadd.f32 %v1819, %v1995
      %v1997 = vpop.f32.mrb[0].mxu0
      %1998 = vmatprep.mubr.bf16.mxu0 %v708
      %1999 = vmatmul.mubr.bf16.gmra.mrb[0].mxu0 %v637
      %v2000 = vpop.f32.mrb[0].mxu0
      %v2001 = vadd.f32 %v1824, %v2000
      %v2002 = vpop.f32.mrb[0].mxu0
      %v2003 = vpop.f32.mrb[0].mxu0
      %v2004 = vadd.f32 %v1827, %v2003
      %v2005 = vpop.f32.mrb[0].mxu0
      %2006 = vmatprep.mubr.bf16.mxu0 %v710
      %2007 = vmatmul.mubr.bf16.gmra.mrb[0].mxu0 %v641
      %v2008 = vpop.f32.mrb[0].mxu0
      %v2009 = vadd.f32 %v1832, %v2008
      %v2010 = vpop.f32.mrb[0].mxu0
      %v2011 = vpop.f32.mrb[0].mxu0
      %v2012 = vadd.f32 %v1835, %v2011
      %v2013 = vpop.f32.mrb[0].mxu0
      %2014 = vmatprep.mubr.bf16.mxu0 %v712
      %2015 = vmatmul.mubr.bf16.gmra.mrb[0].mxu0 %v650
      %v2016 = vpop.f32.mrb[0].mxu0
      %v2017 = vadd.f32 %v1840, %v2016
      %v2018 = vpop.f32.mrb[0].mxu0
      %v2019 = vpop.f32.mrb[0].mxu0
      %v2020 = vadd.f32 %v1843, %v2019
      %v2021 = vpop.f32.mrb[0].mxu0
      %2022 = vmatprep.mubr.bf16.mxu0 %v714
      %2023 = vmatmul.mubr.bf16.gmra.mrb[0].mxu0 %v655
      %v2024 = vpop.f32.mrb[0].mxu0
      %v2025 = vadd.f32 %v1848, %v2024
      %v2026 = vpop.f32.mrb[0].mxu0
      %v2027 = vpop.f32.mrb[0].mxu0
      %v2028 = vadd.f32 %v1851, %v2027
      %v2029 = vpop.f32.mrb[0].mxu0
      %2030 = vdwg.mxu0
      %2031 = vmatprep.subr.bf16.mxu0 0
      %2032 = vmatpush1.bf16.msra.mxu0 %v1404
      %2033 = vmatprep.subr.bf16.mxu0 0
      %2034 = vmatpush1.bf16.msra.mxu0 %v1405
      %2035 = vmatprep.subr.bf16.mxu0 0
      %2036 = vmatpush1.bf16.msra.mxu0 %v1406
      %2037 = vmatprep.subr.bf16.mxu0 0
      %2038 = vmatpush1.bf16.msra.mxu0 %v1407
      %2039 = vmatprep.subr.bf16.mxu0 0
      %2040 = vmatpush1.bf16.msra.mxu0 %v1408
      %2041 = vmatprep.subr.bf16.mxu0 0
      %2042 = vmatpush1.bf16.msra.mxu0 %v1409
      %2043 = vmatprep.subr.bf16.mxu0 0
      %2044 = vmatpush1.bf16.msra.mxu0 %v1410
      %2045 = vmatprep.subr.bf16.mxu0 0
      %2046 = vmatpush1.bf16.msra.mxu0 %v1411
      %2047 = vmatprep.subr.bf16.mxu0 0
      %2048 = vmatpush1.bf16.msra.mxu0 %v1412
      %2049 = vmatprep.subr.bf16.mxu0 0
      %2050 = vmatpush1.bf16.msra.mxu0 %v1413
      %2051 = vmatprep.subr.bf16.mxu0 0
      %2052 = vmatpush1.bf16.msra.mxu0 %v1414
      %2053 = vmatprep.subr.bf16.mxu0 0
      %2054 = vmatpush1.bf16.msra.mxu0 %v1415
      %2055 = vmatprep.subr.bf16.mxu0 0
      %2056 = vmatpush1.bf16.msra.mxu0 %v1416
      %2057 = vmatprep.subr.bf16.mxu0 0
      %2058 = vmatpush1.bf16.msra.mxu0 %v1417
      %2059 = vmatprep.subr.bf16.mxu0 0
      %2060 = vmatpush1.bf16.msra.mxu0 %v1418
      %2061 = vmatprep.subr.bf16.mxu0 0
      %2062 = vmatpush1.bf16.msra.mxu0 %v1419
      %2063 = vmatprep.mubr.bf16.mxu0 %v768
      %2064 = vmatmul.mubr.bf16.gmra.mrb[0].mxu0 %v745
      %v2065 = vpop.f32.mrb[0].mxu0
      %v2066 = vadd.f32 %v1889, %v2065
      %v2067 = vpop.f32.mrb[0].mxu0
      %v2068 = vpop.f32.mrb[0].mxu0
      %v2069 = vadd.f32 %v1892, %v2068
      %v2070 = vpop.f32.mrb[0].mxu0
      %2071 = vmatprep.mubr.bf16.mxu0 %v772
      %2072 = vmatmul.mubr.bf16.gmra.mrb[0].mxu0 %v684
      %v2073 = vpop.f32.mrb[0].mxu0
      %v2074 = vadd.f32 %v1897, %v2073
      %v2075 = vpop.f32.mrb[0].mxu0
      %v2076 = vpop.f32.mrb[0].mxu0
      %v2077 = vadd.f32 %v1900, %v2076
      %v2078 = vpop.f32.mrb[0].mxu0
      %2079 = vmatprep.mubr.bf16.mxu0 %v776
      %2080 = vmatmul.mubr.bf16.gmra.mrb[0].mxu0 %v686
      %v2081 = vpop.f32.mrb[0].mxu0
      %v2082 = vadd.f32 %v1905, %v2081
      %v2083 = vpop.f32.mrb[0].mxu0
      %v2084 = vpop.f32.mrb[0].mxu0
      %v2085 = vadd.f32 %v1908, %v2084
      %v2086 = vpop.f32.mrb[0].mxu0
      %2087 = vmatprep.mubr.bf16.mxu0 %v780
      %2088 = vmatmul.mubr.bf16.gmra.mrb[0].mxu0 %v688
      %v2089 = vpop.f32.mrb[0].mxu0
      %v2090 = vadd.f32 %v1913, %v2089
      %v2091 = vpop.f32.mrb[0].mxu0
      %v2092 = vpop.f32.mrb[0].mxu0
      %v2093 = vadd.f32 %v1916, %v2092
      %v2094 = vpop.f32.mrb[0].mxu0
      %2095 = vmatprep.mubr.bf16.mxu0 %v784
      %2096 = vmatmul.mubr.bf16.gmra.mrb[0].mxu0 %v690
      %v2097 = vpop.f32.mrb[0].mxu0
      %v2098 = vadd.f32 %v1921, %v2097
      %v2099 = vpop.f32.mrb[0].mxu0
      %v2100 = vpop.f32.mrb[0].mxu0
      %v2101 = vadd.f32 %v1924, %v2100
      %v2102 = vpop.f32.mrb[0].mxu0
      %2103 = vmatprep.mubr.bf16.mxu0 %v788
      %2104 = vmatmul.mubr.bf16.gmra.mrb[0].mxu0 %v692
      %v2105 = vpop.f32.mrb[0].mxu0
      %v2106 = vadd.f32 %v1929, %v2105
      %v2107 = vpop.f32.mrb[0].mxu0
      %v2108 = vpop.f32.mrb[0].mxu0
      %v2109 = vadd.f32 %v1932, %v2108
      %v2110 = vpop.f32.mrb[0].mxu0
      %2111 = vmatprep.mubr.bf16.mxu0 %v792
      %2112 = vmatmul.mubr.bf16.gmra.mrb[0].mxu0 %v694
      %v2113 = vpop.f32.mrb[0].mxu0
      %v2114 = vadd.f32 %v1937, %v2113
      %v2115 = vpop.f32.mrb[0].mxu0
      %v2116 = vpop.f32.mrb[0].mxu0
      %v2117 = vadd.f32 %v1940, %v2116
      %v2118 = vpop.f32.mrb[0].mxu0
      %2119 = vmatprep.mubr.bf16.mxu0 %v796
      %2120 = vmatmul.mubr.bf16.gmra.mrb[0].mxu0 %v696
      %v2121 = vpop.f32.mrb[0].mxu0
      %v2122 = vadd.f32 %v1945, %v2121
      %v2123 = vpop.f32.mrb[0].mxu0
      %v2124 = vpop.f32.mrb[0].mxu0
      %v2125 = vadd.f32 %v1948, %v2124
      %v2126 = vpop.f32.mrb[0].mxu0
      %2127 = vmatprep.mubr.bf16.mxu0 %v800
      %2128 = vmatmul.mubr.bf16.gmra.mrb[0].mxu0 %v698
      %v2129 = vpop.f32.mrb[0].mxu0
      %v2130 = vadd.f32 %v1953, %v2129
      %v2131 = vpop.f32.mrb[0].mxu0
      %v2132 = vpop.f32.mrb[0].mxu0
      %v2133 = vadd.f32 %v1956, %v2132
      %v2134 = vpop.f32.mrb[0].mxu0
      %2135 = vmatprep.mubr.bf16.mxu0 %v804
      %2136 = vmatmul.mubr.bf16.gmra.mrb[0].mxu0 %v700
      %v2137 = vpop.f32.mrb[0].mxu0
      %v2138 = vadd.f32 %v1961, %v2137
      %v2139 = vpop.f32.mrb[0].mxu0
      %v2140 = vpop.f32.mrb[0].mxu0
      %v2141 = vadd.f32 %v1964, %v2140
      %v2142 = vpop.f32.mrb[0].mxu0
      %2143 = vmatprep.mubr.bf16.mxu0 %v808
      %2144 = vmatmul.mubr.bf16.gmra.mrb[0].mxu0 %v702
      %v2145 = vpop.f32.mrb[0].mxu0
      %v2146 = vadd.f32 %v1969, %v2145
      %v2147 = vpop.f32.mrb[0].mxu0
      %v2148 = vpop.f32.mrb[0].mxu0
      %v2149 = vadd.f32 %v1972, %v2148
      %v2150 = vpop.f32.mrb[0].mxu0
      %2151 = vmatprep.mubr.bf16.mxu0 %v812
      %2152 = vmatmul.mubr.bf16.gmra.mrb[0].mxu0 %v704
      %v2153 = vpop.f32.mrb[0].mxu0
      %v2154 = vadd.f32 %v1977, %v2153
      %v2155 = vpop.f32.mrb[0].mxu0
      %v2156 = vpop.f32.mrb[0].mxu0
      %v2157 = vadd.f32 %v1980, %v2156
      %v2158 = vpop.f32.mrb[0].mxu0
      %2159 = vmatprep.mubr.bf16.mxu0 %v816
      %2160 = vmatmul.mubr.bf16.gmra.mrb[0].mxu0 %v706
      %v2161 = vpop.f32.mrb[0].mxu0
      %v2162 = vadd.f32 %v1985, %v2161
      %v2163 = vpop.f32.mrb[0].mxu0
      %v2164 = vpop.f32.mrb[0].mxu0
      %v2165 = vadd.f32 %v1988, %v2164
      %v2166 = vpop.f32.mrb[0].mxu0
      %2167 = vmatprep.mubr.bf16.mxu0 %v820
      %2168 = vmatmul.mubr.bf16.gmra.mrb[0].mxu0 %v708
      %v2169 = vpop.f32.mrb[0].mxu0
      %v2170 = vadd.f32 %v1993, %v2169
      %v2171 = vpop.f32.mrb[0].mxu0
      %v2172 = vpop.f32.mrb[0].mxu0
      %v2173 = vadd.f32 %v1996, %v2172
      %v2174 = vpop.f32.mrb[0].mxu0
      %2175 = vmatprep.mubr.bf16.mxu0 %v824
      %2176 = vmatmul.mubr.bf16.gmra.mrb[0].mxu0 %v710
      %v2177 = vpop.f32.mrb[0].mxu0
      %v2178 = vadd.f32 %v2001, %v2177
      %v2179 = vpop.f32.mrb[0].mxu0
      %v2180 = vpop.f32.mrb[0].mxu0
      %v2181 = vadd.f32 %v2004, %v2180
      %v2182 = vpop.f32.mrb[0].mxu0
      %2183 = vmatprep.mubr.bf16.mxu0 %v828
      %2184 = vmatmul.mubr.bf16.gmra.mrb[0].mxu0 %v712
      %v2185 = vpop.f32.mrb[0].mxu0
      %v2186 = vadd.f32 %v2009, %v2185
      %v2187 = vpop.f32.mrb[0].mxu0
      %v2188 = vpop.f32.mrb[0].mxu0
      %v2189 = vadd.f32 %v2012, %v2188
      %v2190 = vpop.f32.mrb[0].mxu0
      %2191 = vmatprep.mubr.bf16.mxu0 %v837
      %2192 = vmatmul.mubr.bf16.gmra.mrb[0].mxu0 %v747
      %v2193 = vpop.f32.mrb[0].mxu0
      %v2194 = vadd.f32 %v2017, %v2193
      %v2195 = vpop.f32.mrb[0].mxu0
      %v2196 = vpop.f32.mrb[0].mxu0
      %v2197 = vadd.f32 %v2020, %v2196
      %v2198 = vpop.f32.mrb[0].mxu0
      %2199 = vmatprep.mubr.bf16.mxu0 %v846
      %2200 = vmatmul.mubr.bf16.gmra.mrb[0].mxu0 %v749
      %v2201 = vpop.f32.mrb[0].mxu0
      %v2202 = vadd.f32 %v2025, %v2201
      %v2203 = vpop.f32.mrb[0].mxu0
      %v2204 = vpop.f32.mrb[0].mxu0
      %v2205 = vadd.f32 %v2028, %v2204
      %v2206 = vpop.f32.mrb[0].mxu0
      %2207 = vdwg.mxu0
      %2208 = vmatprep.subr.bf16.mxu0 0
      %2209 = vmatpush1.bf16.msra.mxu0 %v1420
      %2210 = vmatprep.subr.bf16.mxu0 0
      %2211 = vmatpush1.bf16.msra.mxu0 %v1421
      %2212 = vmatprep.subr.bf16.mxu0 0
      %2213 = vmatpush1.bf16.msra.mxu0 %v1422
      %2214 = vmatprep.subr.bf16.mxu0 0
      %2215 = vmatpush1.bf16.msra.mxu0 %v1423
      %2216 = vmatprep.subr.bf16.mxu0 0
      %2217 = vmatpush1.bf16.msra.mxu0 %v1424
      %2218 = vmatprep.subr.bf16.mxu0 0
      %2219 = vmatpush1.bf16.msra.mxu0 %v1425
      %2220 = vmatprep.subr.bf16.mxu0 0
      %2221 = vmatpush1.bf16.msra.mxu0 %v1426
      %2222 = vmatprep.subr.bf16.mxu0 0
      %2223 = vmatpush1.bf16.msra.mxu0 %v1427
      %2224 = vmatprep.subr.bf16.mxu0 0
      %2225 = vmatpush1.bf16.msra.mxu0 0
      %2226 = vmatprep.subr.bf16.mxu0 0
      %2227 = vmatpush1.bf16.msra.mxu0 0
      %2228 = vmatprep.subr.bf16.mxu0 0
      %2229 = vmatpush1.bf16.msra.mxu0 0
      %2230 = vmatprep.subr.bf16.mxu0 0
      %2231 = vmatpush1.bf16.msra.mxu0 0
      %2232 = vmatprep.subr.bf16.mxu0 0
      %2233 = vmatpush1.bf16.msra.mxu0 0
      %2234 = vmatprep.subr.bf16.mxu0 0
      %2235 = vmatpush1.bf16.msra.mxu0 0
      %2236 = vmatprep.subr.bf16.mxu0 0
      %2237 = vmatpush1.bf16.msra.mxu0 0
      %2238 = vmatprep.subr.bf16.mxu0 0
      %2239 = vmatpush1.bf16.msra.mxu0 0
      %2240 = vmatprep.mubr.bf16.mxu0 0
      %2241 = vmatmul.mubr.bf16.gmra.mrb[0].mxu0 %v871
      %v2242 = vpop.f32.mrb[0].mxu0
      %v2243 = vadd.f32 %v2066, %v2242
      %v2244 = vpop.f32.mrb[0].mxu0
      %v2245 = vpop.f32.mrb[0].mxu0
      %v2246 = vadd.f32 %v2069, %v2245
      %v2247 = vpop.f32.mrb[0].mxu0
      %2248 = vmatprep.mubr.bf16.mxu0 0
      %2249 = vmatmul.mubr.bf16.gmra.mrb[0].mxu0 %v873
      %v2250 = vpop.f32.mrb[0].mxu0
      %v2251 = vadd.f32 %v2074, %v2250
      %v2252 = vpop.f32.mrb[0].mxu0
      %v2253 = vpop.f32.mrb[0].mxu0
      %v2254 = vadd.f32 %v2077, %v2253
      %v2255 = vpop.f32.mrb[0].mxu0
      %2256 = vmatprep.mubr.bf16.mxu0 0
      %2257 = vmatmul.mubr.bf16.gmra.mrb[0].mxu0 %v875
      %v2258 = vpop.f32.mrb[0].mxu0
      %v2259 = vadd.f32 %v2082, %v2258
      %v2260 = vpop.f32.mrb[0].mxu0
      %v2261 = vpop.f32.mrb[0].mxu0
      %v2262 = vadd.f32 %v2085, %v2261
      %v2263 = vpop.f32.mrb[0].mxu0
      %2264 = vmatprep.mubr.bf16.mxu0 0
      %2265 = vmatmul.mubr.bf16.gmra.mrb[0].mxu0 %v877
      %v2266 = vpop.f32.mrb[0].mxu0
      %v2267 = vadd.f32 %v2090, %v2266
      %v2268 = vpop.f32.mrb[0].mxu0
      %v2269 = vpop.f32.mrb[0].mxu0
      %v2270 = vadd.f32 %v2093, %v2269
      %v2271 = vpop.f32.mrb[0].mxu0
      %2272 = vmatprep.mubr.bf16.mxu0 0
      %2273 = vmatmul.mubr.bf16.gmra.mrb[0].mxu0 %v879
      %v2274 = vpop.f32.mrb[0].mxu0
      %v2275 = vadd.f32 %v2098, %v2274
      %v2276 = vpop.f32.mrb[0].mxu0
      %v2277 = vpop.f32.mrb[0].mxu0
      %v2278 = vadd.f32 %v2101, %v2277
      %v2279 = vpop.f32.mrb[0].mxu0
      %2280 = vmatprep.mubr.bf16.mxu0 0
      %2281 = vmatmul.mubr.bf16.gmra.mrb[0].mxu0 %v881
      %v2282 = vpop.f32.mrb[0].mxu0
      %v2283 = vadd.f32 %v2106, %v2282
      %v2284 = vpop.f32.mrb[0].mxu0
      %v2285 = vpop.f32.mrb[0].mxu0
      %v2286 = vadd.f32 %v2109, %v2285
      %v2287 = vpop.f32.mrb[0].mxu0
      %2288 = vmatprep.mubr.bf16.mxu0 0
      %2289 = vmatmul.mubr.bf16.gmra.mrb[0].mxu0 %v883
      %v2290 = vpop.f32.mrb[0].mxu0
      %v2291 = vadd.f32 %v2114, %v2290
      %v2292 = vpop.f32.mrb[0].mxu0
      %v2293 = vpop.f32.mrb[0].mxu0
      %v2294 = vadd.f32 %v2117, %v2293
      %v2295 = vpop.f32.mrb[0].mxu0
      %2296 = vmatprep.mubr.bf16.mxu0 0
      %2297 = vmatmul.mubr.bf16.gmra.mrb[0].mxu0 %v885
      %v2298 = vpop.f32.mrb[0].mxu0
      %v2299 = vadd.f32 %v2122, %v2298
      %v2300 = vpop.f32.mrb[0].mxu0
      %v2301 = vpop.f32.mrb[0].mxu0
      %v2302 = vadd.f32 %v2125, %v2301
      %v2303 = vpop.f32.mrb[0].mxu0
      %2304 = vmatprep.mubr.bf16.mxu0 0
      %2305 = vmatmul.mubr.bf16.gmra.mrb[0].mxu0 %v887
      %v2306 = vpop.f32.mrb[0].mxu0
      %v2307 = vadd.f32 %v2130, %v2306
      %v2308 = vpop.f32.mrb[0].mxu0
      %v2309 = vpop.f32.mrb[0].mxu0
      %v2310 = vadd.f32 %v2133, %v2309
      %v2311 = vpop.f32.mrb[0].mxu0
      %2312 = vmatprep.mubr.bf16.mxu0 0
      %2313 = vmatmul.mubr.bf16.gmra.mrb[0].mxu0 %v889
      %v2314 = vpop.f32.mrb[0].mxu0
      %v2315 = vadd.f32 %v2138, %v2314
      %v2316 = vpop.f32.mrb[0].mxu0
      %v2317 = vpop.f32.mrb[0].mxu0
      %v2318 = vadd.f32 %v2141, %v2317
      %v2319 = vpop.f32.mrb[0].mxu0
      %2320 = vmatprep.mubr.bf16.mxu0 0
      %2321 = vmatmul.mubr.bf16.gmra.mrb[0].mxu0 %v891
      %v2322 = vpop.f32.mrb[0].mxu0
      %v2323 = vadd.f32 %v2146, %v2322
      %v2324 = vpop.f32.mrb[0].mxu0
      %v2325 = vpop.f32.mrb[0].mxu0
      %v2326 = vadd.f32 %v2149, %v2325
      %v2327 = vpop.f32.mrb[0].mxu0
      %2328 = vmatprep.mubr.bf16.mxu0 0
      %2329 = vmatmul.mubr.bf16.gmra.mrb[0].mxu0 %v893
      %v2330 = vpop.f32.mrb[0].mxu0
      %v2331 = vadd.f32 %v2154, %v2330
      %v2332 = vpop.f32.mrb[0].mxu0
      %v2333 = vpop.f32.mrb[0].mxu0
      %v2334 = vadd.f32 %v2157, %v2333
      %v2335 = vpop.f32.mrb[0].mxu0
      %2336 = vmatprep.mubr.bf16.mxu0 0
      %2337 = vmatmul.mubr.bf16.gmra.mrb[0].mxu0 %v895
      %v2338 = vpop.f32.mrb[0].mxu0
      %v2339 = vadd.f32 %v2162, %v2338
      %v2340 = vpop.f32.mrb[0].mxu0
      %v2341 = vpop.f32.mrb[0].mxu0
      %v2342 = vadd.f32 %v2165, %v2341
      %v2343 = vpop.f32.mrb[0].mxu0
      %2344 = vmatprep.mubr.bf16.mxu0 0
      %2345 = vmatmul.mubr.bf16.gmra.mrb[0].mxu0 %v897
      %v2346 = vpop.f32.mrb[0].mxu0
      %v2347 = vadd.f32 %v2170, %v2346
      %v2348 = vpop.f32.mrb[0].mxu0
      %v2349 = vpop.f32.mrb[0].mxu0
      %v2350 = vadd.f32 %v2173, %v2349
      %v2351 = vpop.f32.mrb[0].mxu0
      %2352 = vmatprep.mubr.bf16.mxu0 0
      %2353 = vmatmul.mubr.bf16.gmra.mrb[0].mxu0 %v899
      %v2354 = vpop.f32.mrb[0].mxu0
      %v2355 = vadd.f32 %v2178, %v2354
      %v2356 = vpop.f32.mrb[0].mxu0
      %v2357 = vpop.f32.mrb[0].mxu0
      %v2358 = vadd.f32 %v2181, %v2357
      %v2359 = vpop.f32.mrb[0].mxu0
      %2360 = vmatprep.mubr.bf16.mxu0 0
      %2361 = vmatmul.mubr.bf16.gmra.mrb[0].mxu0 %v901
      %v2362 = vpop.f32.mrb[0].mxu0
      %v2363 = vadd.f32 %v2186, %v2362
      %v2364 = vpop.f32.mrb[0].mxu0
      %v2365 = vpop.f32.mrb[0].mxu0
      %v2366 = vadd.f32 %v2189, %v2365
      %v2367 = vpop.f32.mrb[0].mxu0
      %2368 = vmatprep.mubr.bf16.mxu0 0
      %2369 = vmatmul.mubr.bf16.gmra.mrb[0].mxu0 %v903
      %v2370 = vpop.f32.mrb[0].mxu0
      %v2371 = vadd.f32 %v2194, %v2370
      %v2372 = vpop.f32.mrb[0].mxu0
      %v2373 = vpop.f32.mrb[0].mxu0
      %v2374 = vadd.f32 %v2197, %v2373
      %v2375 = vpop.f32.mrb[0].mxu0
      %2376 = vmatprep.mubr.bf16.mxu0 0
      %2377 = vmatmul.mubr.bf16.gmra.mrb[0].mxu0 %v905
      %v2378 = vpop.f32.mrb[0].mxu0
      %v2379 = vadd.f32 %v2202, %v2378
      %v2380 = vpop.f32.mrb[0].mxu0
      %v2381 = vpop.f32.mrb[0].mxu0
      %v2382 = vadd.f32 %v2205, %v2381
      %v2383 = vpop.f32.mrb[0].mxu0
      %2384 = vdwg.mxu0
      %v2385 = vld [vmem:[%s2] sm:$0xff]
      %v2386 = vld [vmem:[%s2 + $0x8] sm:$0xff]
      %v2387 = vld [vmem:[%s2 + $0x10] sm:$0xff]
      %v2388 = vld [vmem:[%s2 + $0x18] sm:$0xff]
      %v2389 = vld [vmem:[%s2 + $0x20] sm:$0xff]
      %v2390 = vld [vmem:[%s2 + $0x28] sm:$0xff]
      %v2391 = vld [vmem:[%s2 + $0x30] sm:$0xff]
      %v2392 = vld [vmem:[%s2 + $0x38] sm:$0xff]
      %v2393 = vld [vmem:[%s2 + $0x40] sm:$0xff]
      %v2394 = vld [vmem:[%s2 + $0x48] sm:$0xff]
      %v2395 = vld [vmem:[%s2 + $0x50] sm:$0xff]
      %v2396 = vld [vmem:[%s2 + $0x58] sm:$0xff]
      %v2397 = vld [vmem:[%s2 + $0x60] sm:$0xff]
      %v2398 = vld [vmem:[%s2 + $0x68] sm:$0xff]
      %v2399 = vld [vmem:[%s2 + $0x70] sm:$0xff]
      %v2400 = vld [vmem:[%s2 + $0x78] sm:$0xff]
      %v2401 = vld [vmem:[%s2 + $0x80] sm:$0xff]
      %v2402 = vld [vmem:[%s2 + $0x88] sm:$0xff]
      %v2403 = vld [vmem:[%s2 + $0x90] sm:$0xff]
      %v2404 = vld [vmem:[%s2 + $0x98] sm:$0xff]
      %v2405 = vld [vmem:[%s2 + $0xa0] sm:$0xff]
      %v2406 = vld [vmem:[%s2 + $0xa8] sm:$0xff]
      %v2407 = vld [vmem:[%s2 + $0xb0] sm:$0xff]
      %v2408 = vld [vmem:[%s2 + $0xb8] sm:$0xff]
      %v2409 = vld [vmem:[%s2 + $0xc0] sm:$0xff]
      %v2410 = vld [vmem:[%s2 + $0xc8] sm:$0xff]
      %v2411 = vld [vmem:[%s2 + $0xd0] sm:$0xff]
      %v2412 = vld [vmem:[%s2 + $0xd8] sm:$0xff]
      %v2413 = vld [vmem:[%s2 + $0xe0] sm:$0xff]
      %v2414 = vld [vmem:[%s2 + $0xe8] sm:$0xff]
      %v2415 = vld [vmem:[%s2 + $0xf0] sm:$0xff]
      %v2416 = vld [vmem:[%s2 + $0xf8] sm:$0xff]
      %v2417 = vld [vmem:[%s2 + $0x100] sm:$0xff]
      %v2418 = vld [vmem:[%s2 + $0x108] sm:$0xff]
      %v2419 = vld [vmem:[%s2 + $0x110] sm:$0xff]
      %v2420 = vld [vmem:[%s2 + $0x118] sm:$0x3f]
      %2422 = vset.pattern.permute.xlu0 0
      %2423 = vperm.xlu0 %2422, %v2385
      %v2424 = vpop.permute.xlu0 %2423
      %2427 = vset.pattern.permute.xlu0 0
      %2428 = vperm.xlu0 %2427, %v2386
      %v2429 = vpop.permute.xlu0 %2428
      %2432 = vset.pattern.permute.xlu0 0
      %2433 = vperm.xlu0 %2432, %v2387
      %v2434 = vpop.permute.xlu0 %2433
      %2437 = vset.pattern.permute.xlu0 0
      %2438 = vperm.xlu0 %2437, %v2388
      %v2439 = vpop.permute.xlu0 %2438
      %2442 = vset.pattern.permute.xlu0 0
      %2443 = vperm.xlu0 %2442, %v2389
      %v2444 = vpop.permute.xlu0 %2443
      %2447 = vset.pattern.permute.xlu0 0
      %2448 = vperm.xlu0 %2447, %v2390
      %v2449 = vpop.permute.xlu0 %2448
      %2452 = vset.pattern.permute.xlu0 0
      %2453 = vperm.xlu0 %2452, %v2391
      %v2454 = vpop.permute.xlu0 %2453
      %2457 = vset.pattern.permute.xlu0 0
      %2458 = vperm.xlu0 %2457, %v2392
      %v2459 = vpop.permute.xlu0 %2458
      %2462 = vset.pattern.permute.xlu0 0
      %2463 = vperm.xlu0 %2462, %v2393
      %v2464 = vpop.permute.xlu0 %2463
      %2467 = vset.pattern.permute.xlu0 0
      %2468 = vperm.xlu0 %2467, %v2394
      %v2469 = vpop.permute.xlu0 %2468
      %2472 = vset.pattern.permute.xlu0 0
      %2473 = vperm.xlu0 %2472, %v2395
      %v2474 = vpop.permute.xlu0 %2473
      %2477 = vset.pattern.permute.xlu0 0
      %2478 = vperm.xlu0 %2477, %v2396
      %v2479 = vpop.permute.xlu0 %2478
      %2482 = vset.pattern.permute.xlu0 0
      %2483 = vperm.xlu0 %2482, %v2397
      %v2484 = vpop.permute.xlu0 %2483
      %2487 = vset.pattern.permute.xlu0 0
      %2488 = vperm.xlu0 %2487, %v2398
      %v2489 = vpop.permute.xlu0 %2488
      %2492 = vset.pattern.permute.xlu0 0
      %2493 = vperm.xlu0 %2492, %v2399
      %v2494 = vpop.permute.xlu0 %2493
      %2497 = vset.pattern.permute.xlu0 0
      %2498 = vperm.xlu0 %2497, %v2400
      %v2499 = vpop.permute.xlu0 %2498
      %2502 = vset.pattern.permute.xlu0 0
      %2503 = vperm.xlu0 %2502, %v2401
      %v2504 = vpop.permute.xlu0 %2503
      %2507 = vset.pattern.permute.xlu0 0
      %2508 = vperm.xlu0 %2507, %v2402
      %v2509 = vpop.permute.xlu0 %2508
      %2512 = vset.pattern.permute.xlu0 0
      %2513 = vperm.xlu0 %2512, %v2403
      %v2514 = vpop.permute.xlu0 %2513
      %2517 = vset.pattern.permute.xlu0 0
      %2518 = vperm.xlu0 %2517, %v2404
      %v2519 = vpop.permute.xlu0 %2518
      %2522 = vset.pattern.permute.xlu0 0
      %2523 = vperm.xlu0 %2522, %v2405
      %v2524 = vpop.permute.xlu0 %2523
      %2527 = vset.pattern.permute.xlu0 0
      %2528 = vperm.xlu0 %2527, %v2406
      %v2529 = vpop.permute.xlu0 %2528
      %2532 = vset.pattern.permute.xlu0 0
      %2533 = vperm.xlu0 %2532, %v2407
      %v2534 = vpop.permute.xlu0 %2533
      %2537 = vset.pattern.permute.xlu0 0
      %2538 = vperm.xlu0 %2537, %v2408
      %v2539 = vpop.permute.xlu0 %2538
      %2542 = vset.pattern.permute.xlu0 0
      %2543 = vperm.xlu0 %2542, %v2409
      %v2544 = vpop.permute.xlu0 %2543
      %2547 = vset.pattern.permute.xlu0 0
      %2548 = vperm.xlu0 %2547, %v2410
      %v2549 = vpop.permute.xlu0 %2548
      %2552 = vset.pattern.permute.xlu0 0
      %2553 = vperm.xlu0 %2552, %v2411
      %v2554 = vpop.permute.xlu0 %2553
      %2557 = vset.pattern.permute.xlu0 0
      %2558 = vperm.xlu0 %2557, %v2412
      %v2559 = vpop.permute.xlu0 %2558
      %2562 = vset.pattern.permute.xlu0 0
      %2563 = vperm.xlu0 %2562, %v2413
      %v2564 = vpop.permute.xlu0 %2563
      %2567 = vset.pattern.permute.xlu0 0
      %2568 = vperm.xlu0 %2567, %v2414
      %v2569 = vpop.permute.xlu0 %2568
      %2572 = vset.pattern.permute.xlu0 0
      %2573 = vperm.xlu0 %2572, %v2415
      %v2574 = vpop.permute.xlu0 %2573
      %2577 = vset.pattern.permute.xlu0 0
      %2578 = vperm.xlu0 %2577, %v2416
      %v2579 = vpop.permute.xlu0 %2578
      %2582 = vset.pattern.permute.xlu0 0
      %2583 = vperm.xlu0 %2582, %v2417
      %v2584 = vpop.permute.xlu0 %2583
      %2587 = vset.pattern.permute.xlu0 0
      %2588 = vperm.xlu0 %2587, %v2418
      %v2589 = vpop.permute.xlu0 %2588
      %2592 = vset.pattern.permute.xlu0 0
      %2593 = vperm.xlu0 %2592, %v2419
      %v2594 = vpop.permute.xlu0 %2593
      %2597 = vset.pattern.permute.xlu0 0
      %2598 = vperm.xlu0 %2597, %v2420
      %v2599 = vpop.permute.xlu0 %2598
      %v2601 = vmul.f32 %v2243, %v2424
      %v2602 = vmul.f32 %v2246, %v2429
      %v2603 = vmul.f32 %v2251, %v2434
      %v2604 = vmul.f32 %v2254, %v2439
      %v2605 = vmul.f32 %v2259, %v2444
      %v2606 = vmul.f32 %v2262, %v2449
      %v2607 = vmul.f32 %v2267, %v2454
      %v2608 = vmul.f32 %v2270, %v2459
      %v2609 = vmul.f32 %v2275, %v2464
      %v2610 = vmul.f32 %v2278, %v2469
      %v2611 = vmul.f32 %v2283, %v2474
      %v2612 = vmul.f32 %v2286, %v2479
      %v2613 = vmul.f32 %v2291, %v2484
      %v2614 = vmul.f32 %v2294, %v2489
      %v2615 = vmul.f32 %v2299, %v2494
      %v2616 = vmul.f32 %v2302, %v2499
      %v2617 = vmul.f32 %v2307, %v2504
      %v2618 = vmul.f32 %v2310, %v2509
      %v2619 = vmul.f32 %v2315, %v2514
      %v2620 = vmul.f32 %v2318, %v2519
      %v2621 = vmul.f32 %v2323, %v2524
      %v2622 = vmul.f32 %v2326, %v2529
      %v2623 = vmul.f32 %v2331, %v2534
      %v2624 = vmul.f32 %v2334, %v2539
      %v2625 = vmul.f32 %v2339, %v2544
      %v2626 = vmul.f32 %v2342, %v2549
      %v2627 = vmul.f32 %v2347, %v2554
      %v2628 = vmul.f32 %v2350, %v2559
      %v2629 = vmul.f32 %v2355, %v2564
      %v2630 = vmul.f32 %v2358, %v2569
      %v2631 = vmul.f32 %v2363, %v2574
      %v2632 = vmul.f32 %v2366, %v2579
      %v2633 = vmul.f32 %v2371, %v2584
      %v2634 = vmul.f32 %v2374, %v2589
      %v2635 = vmul.f32 %v2379, %v2594
      %v2636 = vmul.f32 %v2382, %v2599
      %v2637 = vadd.f32 %v2601, %v2602
      %v2638 = vadd.f32 %v2637, %v2603
      %v2639 = vadd.f32 %v2638, %v2604
      %v2640 = vadd.f32 %v2639, %v2605
      %v2641 = vadd.f32 %v2640, %v2606
      %v2642 = vadd.f32 %v2641, %v2607
      %v2643 = vadd.f32 %v2642, %v2608
      %v2644 = vadd.f32 %v2643, %v2609
      %v2645 = vadd.f32 %v2644, %v2610
      %v2646 = vadd.f32 %v2645, %v2611
      %v2647 = vadd.f32 %v2646, %v2612
      %v2648 = vadd.f32 %v2647, %v2613
      %v2649 = vadd.f32 %v2648, %v2614
      %v2650 = vadd.f32 %v2649, %v2615
      %v2651 = vadd.f32 %v2650, %v2616
      %v2652 = vadd.f32 %v2651, %v2617
      %v2653 = vadd.f32 %v2652, %v2618
      %v2654 = vadd.f32 %v2653, %v2619
      %v2655 = vadd.f32 %v2654, %v2620
      %v2656 = vadd.f32 %v2655, %v2621
      %v2657 = vadd.f32 %v2656, %v2622
      %v2658 = vadd.f32 %v2657, %v2623
      %v2659 = vadd.f32 %v2658, %v2624
      %v2660 = vadd.f32 %v2659, %v2625
      %v2661 = vadd.f32 %v2660, %v2626
      %v2662 = vadd.f32 %v2661, %v2627
      %v2663 = vadd.f32 %v2662, %v2628
      %v2664 = vadd.f32 %v2663, %v2629
      %v2665 = vadd.f32 %v2664, %v2630
      %v2666 = vadd.f32 %v2665, %v2631
      %v2667 = vadd.f32 %v2666, %v2632
      %v2668 = vadd.f32 %v2667, %v2633
      %v2669 = vadd.f32 %v2668, %v2634
      %v2670 = vadd.f32 %v2669, %v2635
      %vm2671 = vcmask 1045504
      %v2672 = vsel %vm2671, %v2636, 0.0
      %v2673 = vadd.f32 %v2670, %v2672
      %v2674 = vrot.slane %v2673, 4
      %v2675 = vadd.f32 %v2673, %v2674
      %v2676 = vrot.slane %v2675, 2
      %v2677 = vadd.f32 %v2675, %v2676
      %v2678 = vrot.slane %v2677, 1
      %v2679 = vadd.f32 %v2677, %v2678
      %v2680 = vmul.f32 %v2601, %v2243
      %v2681 = vmul.f32 %v2602, %v2246
      %v2682 = vmul.f32 %v2603, %v2251
      %v2683 = vmul.f32 %v2604, %v2254
      %v2684 = vmul.f32 %v2605, %v2259
      %v2685 = vmul.f32 %v2606, %v2262
      %v2686 = vmul.f32 %v2607, %v2267
      %v2687 = vmul.f32 %v2608, %v2270
      %v2688 = vmul.f32 %v2609, %v2275
      %v2689 = vmul.f32 %v2610, %v2278
      %v2690 = vmul.f32 %v2611, %v2283
      %v2691 = vmul.f32 %v2612, %v2286
      %v2692 = vmul.f32 %v2613, %v2291
      %v2693 = vmul.f32 %v2614, %v2294
      %v2694 = vmul.f32 %v2615, %v2299
      %v2695 = vmul.f32 %v2616, %v2302
      %v2696 = vmul.f32 %v2617, %v2307
      %v2697 = vmul.f32 %v2618, %v2310
      %v2698 = vmul.f32 %v2619, %v2315
      %v2699 = vmul.f32 %v2620, %v2318
      %v2700 = vmul.f32 %v2621, %v2323
      %v2701 = vmul.f32 %v2622, %v2326
      %v2702 = vmul.f32 %v2623, %v2331
      %v2703 = vmul.f32 %v2624, %v2334
      %v2704 = vmul.f32 %v2625, %v2339
      %v2705 = vmul.f32 %v2626, %v2342
      %v2706 = vmul.f32 %v2627, %v2347
      %v2707 = vmul.f32 %v2628, %v2350
      %v2708 = vmul.f32 %v2629, %v2355
      %v2709 = vmul.f32 %v2630, %v2358
      %v2710 = vmul.f32 %v2631, %v2363
      %v2711 = vmul.f32 %v2632, %v2366
      %v2712 = vmul.f32 %v2633, %v2371
      %v2713 = vmul.f32 %v2634, %v2374
      %v2714 = vmul.f32 %v2635, %v2379
      %v2715 = vmul.f32 %v2636, %v2382
      %v2716 = vadd.f32 %v2680, %v2681
      %v2717 = vadd.f32 %v2716, %v2682
      %v2718 = vadd.f32 %v2717, %v2683
      %v2719 = vadd.f32 %v2718, %v2684
      %v2720 = vadd.f32 %v2719, %v2685
      %v2721 = vadd.f32 %v2720, %v2686
      %v2722 = vadd.f32 %v2721, %v2687
      %v2723 = vadd.f32 %v2722, %v2688
      %v2724 = vadd.f32 %v2723, %v2689
      %v2725 = vadd.f32 %v2724, %v2690
      %v2726 = vadd.f32 %v2725, %v2691
      %v2727 = vadd.f32 %v2726, %v2692
      %v2728 = vadd.f32 %v2727, %v2693
      %v2729 = vadd.f32 %v2728, %v2694
      %v2730 = vadd.f32 %v2729, %v2695
      %v2731 = vadd.f32 %v2730, %v2696
      %v2732 = vadd.f32 %v2731, %v2697
      %v2733 = vadd.f32 %v2732, %v2698
      %v2734 = vadd.f32 %v2733, %v2699
      %v2735 = vadd.f32 %v2734, %v2700
      %v2736 = vadd.f32 %v2735, %v2701
      %v2737 = vadd.f32 %v2736, %v2702
      %v2738 = vadd.f32 %v2737, %v2703
      %v2739 = vadd.f32 %v2738, %v2704
      %v2740 = vadd.f32 %v2739, %v2705
      %v2741 = vadd.f32 %v2740, %v2706
      %v2742 = vadd.f32 %v2741, %v2707
      %v2743 = vadd.f32 %v2742, %v2708
      %v2744 = vadd.f32 %v2743, %v2709
      %v2745 = vadd.f32 %v2744, %v2710
      %v2746 = vadd.f32 %v2745, %v2711
      %v2747 = vadd.f32 %v2746, %v2712
      %v2748 = vadd.f32 %v2747, %v2713
      %v2749 = vadd.f32 %v2748, %v2714
      %v2750 = vsel %vm2671, %v2715, 0.0
      %v2751 = vadd.f32 %v2749, %v2750
      %v2752 = vrot.slane %v2751, 4
      %v2753 = vadd.f32 %v2751, %v2752
      %v2754 = vrot.slane %v2753, 2
      %v2755 = vadd.f32 %v2753, %v2754
      %v2756 = vrot.slane %v2755, 1
      %v2757 = vadd.f32 %v2755, %v2756
      %v2758 = vmul.f32 %v2679, 0.00390625
      %v2759 = vmul.f32 %v2757, 0.00390625
      %v2760 = vmul.f32 %v2758, %v2758
      %v2761 = vsub.f32 %v2759, %v2760
      %v2762 = vmax.f32 %v2761, 0.0
      %v2763 = vsub.f32 %v2243, %v2758
      %v2764 = vsub.f32 %v2246, %v2758
      %v2765 = vsub.f32 %v2251, %v2758
      %v2766 = vsub.f32 %v2254, %v2758
      %v2767 = vsub.f32 %v2259, %v2758
      %v2768 = vsub.f32 %v2262, %v2758
      %v2769 = vsub.f32 %v2267, %v2758
      %v2770 = vsub.f32 %v2270, %v2758
      %v2771 = vsub.f32 %v2275, %v2758
      %v2772 = vsub.f32 %v2278, %v2758
      %v2773 = vsub.f32 %v2283, %v2758
      %v2774 = vsub.f32 %v2286, %v2758
      %v2775 = vsub.f32 %v2291, %v2758
      %v2776 = vsub.f32 %v2294, %v2758
      %v2777 = vsub.f32 %v2299, %v2758
      %v2778 = vsub.f32 %v2302, %v2758
      %v2779 = vsub.f32 %v2307, %v2758
      %v2780 = vsub.f32 %v2310, %v2758
      %v2781 = vsub.f32 %v2315, %v2758
      %v2782 = vsub.f32 %v2318, %v2758
      %v2783 = vsub.f32 %v2323, %v2758
      %v2784 = vsub.f32 %v2326, %v2758
      %v2785 = vsub.f32 %v2331, %v2758
      %v2786 = vsub.f32 %v2334, %v2758
      %v2787 = vsub.f32 %v2339, %v2758
      %v2788 = vsub.f32 %v2342, %v2758
      %v2789 = vsub.f32 %v2347, %v2758
      %v2790 = vsub.f32 %v2350, %v2758
      %v2791 = vsub.f32 %v2355, %v2758
      %v2792 = vsub.f32 %v2358, %v2758
      %v2793 = vsub.f32 %v2363, %v2758
      %v2794 = vsub.f32 %v2366, %v2758
      %v2795 = vsub.f32 %v2371, %v2758
      %v2796 = vsub.f32 %v2374, %v2758
      %v2797 = vsub.f32 %v2379, %v2758
      %v2798 = vsub.f32 %v2382, %v2758
      %v2799 = vadd.f32 %v2762, 1e-05
      %v2800 = vrsqrt.pop %v2799
      %v2801 = vmul.f32 %v2763, %v2800
      %v2802 = vmul.f32 %v2764, %v2800
      %v2803 = vmul.f32 %v2765, %v2800
      %v2804 = vmul.f32 %v2766, %v2800
      %v2805 = vmul.f32 %v2767, %v2800
      %v2806 = vmul.f32 %v2768, %v2800
      %v2807 = vmul.f32 %v2769, %v2800
      %v2808 = vmul.f32 %v2770, %v2800
      %v2809 = vmul.f32 %v2771, %v2800
      %v2810 = vmul.f32 %v2772, %v2800
      %v2811 = vmul.f32 %v2773, %v2800
      %v2812 = vmul.f32 %v2774, %v2800
      %v2813 = vmul.f32 %v2775, %v2800
      %v2814 = vmul.f32 %v2776, %v2800
      %v2815 = vmul.f32 %v2777, %v2800
      %v2816 = vmul.f32 %v2778, %v2800
      %v2817 = vmul.f32 %v2779, %v2800
      %v2818 = vmul.f32 %v2780, %v2800
      %v2819 = vmul.f32 %v2781, %v2800
      %v2820 = vmul.f32 %v2782, %v2800
      %v2821 = vmul.f32 %v2783, %v2800
      %v2822 = vmul.f32 %v2784, %v2800
      %v2823 = vmul.f32 %v2785, %v2800
      %v2824 = vmul.f32 %v2786, %v2800
      %v2825 = vmul.f32 %v2787, %v2800
      %v2826 = vmul.f32 %v2788, %v2800
      %v2827 = vmul.f32 %v2789, %v2800
      %v2828 = vmul.f32 %v2790, %v2800
      %v2829 = vmul.f32 %v2791, %v2800
      %v2830 = vmul.f32 %v2792, %v2800
      %v2831 = vmul.f32 %v2793, %v2800
      %v2832 = vmul.f32 %v2794, %v2800
      %v2833 = vmul.f32 %v2795, %v2800
      %v2834 = vmul.f32 %v2796, %v2800
      %v2835 = vmul.f32 %v2797, %v2800
      %v2836 = vmul.f32 %v2798, %v2800
      %v2837 = vmax.f32 %v2801, 0.0
      %v2838 = vmax.f32 %v2802, 0.0
      %v2839 = vmax.f32 %v2803, 0.0
      %v2840 = vmax.f32 %v2804, 0.0
      %v2841 = vmax.f32 %v2805, 0.0
      %v2842 = vmax.f32 %v2806, 0.0
      %v2843 = vmax.f32 %v2807, 0.0
      %v2844 = vmax.f32 %v2808, 0.0
      %v2845 = vmax.f32 %v2809, 0.0
      %v2846 = vmax.f32 %v2810, 0.0
      %v2847 = vmax.f32 %v2811, 0.0
      %v2848 = vmax.f32 %v2812, 0.0
      %v2849 = vmax.f32 %v2813, 0.0
      %v2850 = vmax.f32 %v2814, 0.0
      %v2851 = vmax.f32 %v2815, 0.0
      %v2852 = vmax.f32 %v2816, 0.0
      %v2853 = vmax.f32 %v2817, 0.0
      %v2854 = vmax.f32 %v2818, 0.0
      %v2855 = vmax.f32 %v2819, 0.0
      %v2856 = vmax.f32 %v2820, 0.0
      %v2857 = vmax.f32 %v2821, 0.0
      %v2858 = vmax.f32 %v2822, 0.0
      %v2859 = vmax.f32 %v2823, 0.0
      %v2860 = vmax.f32 %v2824, 0.0
      %v2861 = vmax.f32 %v2825, 0.0
      %v2862 = vmax.f32 %v2826, 0.0
      %v2863 = vmax.f32 %v2827, 0.0
      %v2864 = vmax.f32 %v2828, 0.0
      %v2865 = vmax.f32 %v2829, 0.0
      %v2866 = vmax.f32 %v2830, 0.0
      %v2867 = vmax.f32 %v2831, 0.0
      %v2868 = vmax.f32 %v2832, 0.0
      %v2869 = vmax.f32 %v2833, 0.0
      %v2870 = vmax.f32 %v2834, 0.0
      %v2871 = vmax.f32 %v2835, 0.0
      %v2872 = vmax.f32 %v2836, 0.0
      %2873 = vst [vmem:[%s170] sm:$0xff] %v2837
      %2874 = vst [vmem:[%s170 + $0x8] sm:$0xff] %v2838
      %2875 = vst [vmem:[%s170 + $0x10] sm:$0xff] %v2839
      %2876 = vst [vmem:[%s170 + $0x18] sm:$0xff] %v2840
      %2877 = vst [vmem:[%s170 + $0x20] sm:$0xff] %v2841
      %2878 = vst [vmem:[%s170 + $0x28] sm:$0xff] %v2842
      %2879 = vst [vmem:[%s170 + $0x30] sm:$0xff] %v2843
      %2880 = vst [vmem:[%s170 + $0x38] sm:$0xff] %v2844
      %2881 = vst [vmem:[%s170 + $0x40] sm:$0xff] %v2845
      %2882 = vst [vmem:[%s170 + $0x48] sm:$0xff] %v2846
      %2883 = vst [vmem:[%s170 + $0x50] sm:$0xff] %v2847
      %2884 = vst [vmem:[%s170 + $0x58] sm:$0xff] %v2848
      %2885 = vst [vmem:[%s170 + $0x60] sm:$0xff] %v2849
      %2886 = vst [vmem:[%s170 + $0x68] sm:$0xff] %v2850
      %2887 = vst [vmem:[%s170 + $0x70] sm:$0xff] %v2851
      %2888 = vst [vmem:[%s170 + $0x78] sm:$0xff] %v2852
      %2889 = vst [vmem:[%s170 + $0x80] sm:$0xff] %v2853
      %2890 = vst [vmem:[%s170 + $0x88] sm:$0xff] %v2854
      %2891 = vst [vmem:[%s170 + $0x90] sm:$0xff] %v2855
      %2892 = vst [vmem:[%s170 + $0x98] sm:$0xff] %v2856
      %2893 = vst [vmem:[%s170 + $0xa0] sm:$0xff] %v2857
      %2894 = vst [vmem:[%s170 + $0xa8] sm:$0xff] %v2858
      %2895 = vst [vmem:[%s170 + $0xb0] sm:$0xff] %v2859
      %2896 = vst [vmem:[%s170 + $0xb8] sm:$0xff] %v2860
      %2897 = vst [vmem:[%s170 + $0xc0] sm:$0xff] %v2861
      %2898 = vst [vmem:[%s170 + $0xc8] sm:$0xff] %v2862
      %2899 = vst [vmem:[%s170 + $0xd0] sm:$0xff] %v2863
      %2900 = vst [vmem:[%s170 + $0xd8] sm:$0xff] %v2864
      %2901 = vst [vmem:[%s170 + $0xe0] sm:$0xff] %v2865
      %2902 = vst [vmem:[%s170 + $0xe8] sm:$0xff] %v2866
      %2903 = vst [vmem:[%s170 + $0xf0] sm:$0xff] %v2867
      %2904 = vst [vmem:[%s170 + $0xf8] sm:$0xff] %v2868
      %2905 = vst [vmem:[%s170 + $0x100] sm:$0xff] %v2869
      %2906 = vst [vmem:[%s170 + $0x108] sm:$0xff] %v2870
      %2907 = vst [vmem:[%s170 + $0x110] sm:$0xff] %v2871
      %2908 = vst [vmem:[%s170 + $0x118] sm:$0x3f] %v2872
      %p2909 = scmp.lt.s32.totalorder %s14, 1
      %s2910 = scalar_select %p2909, %s14, 1
      %s2911 = smul.addr %s2910, 36
      %s2912 = smul.addr %s2911, 8
      %s2913 = scalar_lea.vmem %s3, %s2912
      // Predicated region
      $region33: #{deconv_layer.1} parent=31 // pred_check
        %p2914 = pneg %p100
      $region34: #{deconv_layer.1} parent=31 // pred_check_branch
        %2916 = sbr.rel (%p2914) target = $region36
      $region35: #{deconv_layer.1} parent=31 // pred_region
        _
      $region36: #{deconv_layer.1} parent=31 // pred_fallthru
        _
    $region32: #{deconv_layer.1} parent=5 // pred_fallthru
      _
    %p2917 = scmp.le.s32.totalorder 2, %s9
    // Predicated region
    $region37: #{deconv_layer.1} parent=5 // pred_check
      %p2918 = pneg %p2917
    $region38: #{deconv_layer.1} parent=5 // pred_check_branch
      %2920 = sbr.rel (%p2918) target = $region40
    $region39: #{deconv_layer.1} parent=5 // pred_region
      %s2921 = ssub.s32 %s9, 2
      // Predicated region
      $region41: #{deconv_layer.1} parent=39 // pred_check
        %p2922 = pneg %p106
      $region42: #{deconv_layer.1} parent=39 // pred_check_branch
        %2924 = sbr.rel (%p2922) target = $region44
      $region43: #{deconv_layer.1} parent=39 // pred_region
        %p2925 = scmp.lt.s32.totalorder %s15, 1
        %s2926 = scalar_select %p2925, %s15, 1
        %s2927 = smul.addr %s2926, 36
        %s2928 = smul.addr %s2927, 8
        %s2929 = scalar_lea.vmem %s3, %s2928
      $region44: #{deconv_layer.1} parent=39 // pred_fallthru
        _
    $region40: #{deconv_layer.1} parent=5 // pred_fallthru
      _
  $region6: #{deconv_layer.1} parent=0 // loop_footer
    %s13 = sadd.s32 1, %s9
  $region7: #{deconv_layer.1} parent=0 // loop_footer_branch
    %8 = sbr.rel target = $region3
  $region8: #{deconv_layer.1} parent=0 // loop_exit
    _

</llo_original>
